<compile_context>
chip_gen: v7x
topology: tpu7x:2x2x1
jax: 0.10.0
libtpu: 0.0.40
codegen_flags: <defaults>
</compile_context>

<pallas_src>
import jax
import jax.numpy as jnp
from jax.experimental import pallas as pl
from jax.experimental.pallas import tpu as pltpu

# ---- synthetic config (mirrors cfg.GAN.NDF / cfg.TEXT.TXT_FEATURE_DIM / cfg.KEYPOINT.DIM) ----
NDF = 4              # -> 2*NDF = 8 image / output channels
NT_D = 8             # text feature dim
KP_DIM = 16          # keypoint_dim == spatial H == W
NUM_KP = 4           # number of keypoint heatmaps in `locs`
B = 2

CIMG = 2 * NDF               # image channels (= conv out channels)
CIN = CIMG + NT_D            # conv in-channels  (= 16)
COUT = CIMG                  # conv out-channels (= 8)
H = W = KP_DIM
HW = H * W
PADLEN = 2 * (W + 1) + HW    # flattened image + one padded row (+1 elem) on each side
EPS = 1e-5
NEG_SLOPE = 0.2


def keymuld_kernel(img_ref, txt_ref, locs_ref, w_ref, cb_ref, gamma_ref, beta_ref,
                   out_ref, fpad_ref, patch_ref):
    """All refs live fully in VMEM (shapes are tiny).

    img_ref  : (B, CIMG, H*W)     image, NCHW flattened over (H, W)
    txt_ref  : (B, NT_D, 1)       text features
    locs_ref : (B, NUM_KP, H*W)   keypoint heatmaps, flattened
    w_ref    : (COUT, 9*CIN)      conv weight, k = (dy*3 + dx)*CIN + cin
    cb/gamma/beta_ref : (COUT, 1) conv bias / BN weight / BN bias
    out_ref  : (B, COUT, H*W)     lane-dense output (NCHW flattened)
    fpad_ref : (B, CIN, PADLEN)   scratch: row-padded flattened concat(img, text)
    patch_ref: (9*CIN, B*H*W)     scratch: im2col slab
    """
    # ---- 1. row-padded, lane-flattened concat(img, replicated text) ----------------
    # fpad[b, c, (W+1) + p] holds pixel p = y*W + x of channel c; the (W+1) zeros on
    # each side make every vertically-out-of-bounds 3x3 tap read a zero (SAME pad).
    fpad_ref[...] = jnp.zeros(fpad_ref.shape, fpad_ref.dtype)
    for b in range(B):
        fpad_ref[b, :CIMG, W + 1:W + 1 + HW] = img_ref[b]
        # text channels are spatially constant inside the image
        fpad_ref[b, CIMG:, W + 1:W + 1 + HW] = jnp.broadcast_to(txt_ref[b], (NT_D, HW))

    # ---- 2. im2col: each tap is a lane-offset slice of fpad; horizontal-border taps
    #         additionally need a column mask (they would otherwise wrap across rows).
    # x-coordinate of every flattened column (W is a power of two here; use % W otherwise)
    xi = jax.lax.broadcasted_iota(jnp.int32, (1, HW), 1) & (W - 1)
    col_ok = [xi > 0, None, xi < (W - 1)]            # dx = 0, 1, 2
    for b in range(B):
        for dy in range(3):
            for dx in range(3):
                tap = dy * 3 + dx
                off = dy * W + dx
                blk = fpad_ref[b, :, off:off + HW]    # (CIN, HW) shifted load
                if col_ok[dx] is not None:
                    blk = jnp.where(col_ok[dx], blk, 0.0)
                # tile-aligned, lane-dense store into the slab
                patch_ref[tap * CIN:(tap + 1) * CIN, b * HW:(b + 1) * HW] = blk

    # ---- 3. conv as one K=144 MXU matmul: (COUT, 9*CIN) @ (9*CIN, B*H*W) ------------
    acc = jnp.dot(w_ref[...], patch_ref[...], preferred_element_type=jnp.float32)
    acc = acc + cb_ref[...]                           # conv bias, (COUT, 1) lane-broadcast
    # NOTE: on v6e/v7x the matmul operands could be cast to bf16 (MXU-native) while
    # keeping the f32 accumulator; left in f32 here to stay within reference tolerance.

    # ---- 4. train-mode BatchNorm (single-pass batch stats) + LeakyReLU(0.2) ---------
    inv_n = 1.0 / float(B * HW)
    mean = jnp.sum(acc, axis=1, keepdims=True) * inv_n                    # (COUT, 1)
    var = jnp.sum(acc * acc, axis=1, keepdims=True) * inv_n - mean * mean  # biased var
    scale = gamma_ref[...] * jax.lax.rsqrt(var + EPS)
    shift = beta_ref[...] - mean * scale
    y = acc * scale + shift
    y = jnp.maximum(y, NEG_SLOPE * y)                 # LeakyReLU(0.2)

    # ---- 5. keypoint mask + lane-dense (256-wide) unmasked stores --------------------
    for b in range(B):
        mask = jnp.clip(jnp.sum(locs_ref[b], axis=0, keepdims=True), 0.0, 1.0)  # (1, HW)
        out_ref[b] = (y[:, b * HW:(b + 1) * HW] * mask).astype(out_ref.dtype)


def key_mul_d(imgGlobal, prep_txt_d, locs, w_oihw, conv_b, gamma, beta):
    """PyTorch-convention inputs (NCHW / OIHW); returns NCHW output."""
    # Free, contiguous reshapes only (no transpose / broadcast / pad XLA ops).
    img_flat = imgGlobal.reshape(B, CIMG, HW)
    locs_flat = locs.reshape(B, NUM_KP, HW)
    txt = prep_txt_d.reshape(B, NT_D, 1)
    # Tiny weight re-layout (would be folded into parameter loading in a real model):
    # (COUT, CIN, 3, 3) -> (COUT, (dy, dx, cin)) to match the im2col row ordering.
    w2d = jnp.transpose(w_oihw, (0, 2, 3, 1)).reshape(COUT, 9 * CIN)

    flops = 2 * COUT * (9 * CIN) * (B * HW)
    bytes_accessed = 4 * (img_flat.size + txt.size + locs_flat.size + w2d.size
                          + 3 * COUT + B * COUT * HW)

    # NOTE: at larger B/H a grid over B with dimension_semantics=("parallel",) would
    # shard across v7x's two TensorCores; at this size a single gridless call is
    # launch-bound and BN couples the whole batch, so no grid is used.
    out = pl.pallas_call(
        keymuld_kernel,
        out_shape=jax.ShapeDtypeStruct((B, COUT, HW), jnp.float32),
        in_specs=[pl.BlockSpec(memory_space=pltpu.MemorySpace.VMEM)] * 7,
        out_specs=pl.BlockSpec(memory_space=pltpu.MemorySpace.VMEM),
        scratch_shapes=[pltpu.VMEM((B, CIN, PADLEN), jnp.float32),
                        pltpu.VMEM((9 * CIN, B * HW), jnp.float32)],
        cost_estimate=pl.CostEstimate(flops=flops, transcendentals=COUT,
                                      bytes_accessed=bytes_accessed),
    )(img_flat, txt, locs_flat, w2d,
      conv_b.reshape(COUT, 1), gamma.reshape(COUT, 1), beta.reshape(COUT, 1))

    # (B, COUT, H*W) is NCHW flattened -> free metadata reshape back to (B, COUT, H, W).
    return out.reshape(B, COUT, H, W)


def key_mul_d_ref(imgGlobal, prep_txt_d, locs, w_oihw, conv_b, gamma, beta):
    """Pure-JAX reference (same math, XLA conv) for a correctness check."""
    img = jnp.transpose(imgGlobal, (0, 2, 3, 1))
    txt = jnp.broadcast_to(prep_txt_d[:, None, None, :], (B, H, W, NT_D))
    x = jnp.concatenate([img, txt], axis=-1)
    w_hwio = jnp.transpose(w_oihw, (2, 3, 1, 0))
    y = jax.lax.conv_general_dilated(
        x, w_hwio, window_strides=(1, 1), padding=((1, 1), (1, 1)),
        dimension_numbers=("NHWC", "HWIO", "NHWC"),
        precision=jax.lax.Precision.HIGHEST) + conv_b
    mean = jnp.mean(y, axis=(0, 1, 2), keepdims=True)
    var = jnp.mean((y - mean) ** 2, axis=(0, 1, 2), keepdims=True)
    y = (y - mean) * gamma / jnp.sqrt(var + EPS) + beta
    y = jnp.where(y >= 0, y, NEG_SLOPE * y)
    mask = jnp.clip(
        jnp.sum(jnp.transpose(locs, (0, 2, 3, 1)), axis=-1, keepdims=True), 0.0, 1.0)
    return jnp.transpose(y * mask, (0, 3, 1, 2))


if __name__ == "__main__":
    key = jax.random.PRNGKey(0)
    k_img, k_txt, k_locs, k_w, k_b, k_g, k_be = jax.random.split(key, 7)

    imgGlobal = jax.random.normal(k_img, (B, 2 * NDF, H, W), jnp.float32)     # (2, 8, 16, 16)
    prep_txt_d = jax.random.normal(k_txt, (B, NT_D), jnp.float32)             # (2, 8)
    locs = jax.random.uniform(k_locs, (B, NUM_KP, H, W), jnp.float32,
                              minval=0.0, maxval=0.6)                         # (2, 4, 16, 16)

    # Deterministic synthetic parameters (Conv2d + BatchNorm2d shapes from __init__).
    w_oihw = 0.1 * jax.random.normal(k_w, (COUT, CIN, 3, 3), jnp.float32)
    conv_b = 0.1 * jax.random.normal(k_b, (COUT,), jnp.float32)
    gamma = 1.0 + 0.1 * jax.random.normal(k_g, (COUT,), jnp.float32)
    beta = 0.05 * jax.random.normal(k_be, (COUT,), jnp.float32)

    out = jax.jit(key_mul_d)(imgGlobal, prep_txt_d, locs, w_oihw, conv_b, gamma, beta)
    out = jax.block_until_ready(out)

    ref = key_mul_d_ref(imgGlobal, prep_txt_d, locs, w_oihw, conv_b, gamma, beta)
    assert out.shape == (B, COUT, H, W)
    assert jnp.allclose(out, ref, atol=2e-3, rtol=2e-3), "kernel/reference mismatch"

    print("KERNEL_OK")
</pallas_src>

<mosaic_0001>
module attributes {stable_mosaic.version = 11 : i64} {
  func.func @keymuld_kernel(%arg0: memref<2x8x256xf32, #tpu.memory_space<vmem>>, %arg1: memref<2x8x1xf32, #tpu.memory_space<vmem>>, %arg2: memref<2x4x256xf32, #tpu.memory_space<vmem>>, %arg3: memref<8x144xf32, #tpu.memory_space<vmem>>, %arg4: memref<8x1xf32, #tpu.memory_space<vmem>>, %arg5: memref<8x1xf32, #tpu.memory_space<vmem>>, %arg6: memref<8x1xf32, #tpu.memory_space<vmem>>, %arg7: memref<2x8x256xf32, #tpu.memory_space<vmem>>, %arg8: memref<2x16x290xf32, #tpu.memory_space<vmem>>, %arg9: memref<144x512xf32, #tpu.memory_space<vmem>>) attributes {dimension_semantics = [], scalar_prefetch = 0 : i64, scratch_operands = 2 : i64, tpu.core_type = #tpu.core_type<tc>} {
    %cst = arith.constant 0.000000e+00 : f32
    %0 = vector.broadcast %cst : f32 to vector<2x16x290xf32>
    %c0 = arith.constant 0 : index
    %c0_0 = arith.constant 0 : index
    %c0_1 = arith.constant 0 : index
    %1 = vector.load %arg8[%c0, %c0_0, %c0_1] : memref<2x16x290xf32, #tpu.memory_space<vmem>>, vector<2x16x290xf32>
    tpu.vector_store %arg8[%c0, %c0_0, %c0_1], %0 {strides = array<i32>} : memref<2x16x290xf32, #tpu.memory_space<vmem>>, vector<2x16x290xf32>,
    %c0_2 = arith.constant 0 : index
    %c0_3 = arith.constant 0 : index
    %c0_4 = arith.constant 0 : index
    %2 = vector.load %arg0[%c0_2, %c0_3, %c0_4] : memref<2x8x256xf32, #tpu.memory_space<vmem>>, vector<1x8x256xf32>
    %3 = vector.shape_cast %2 : vector<1x8x256xf32> to vector<8x256xf32>
    %c0_5 = arith.constant 0 : index
    %c0_6 = arith.constant 0 : index
    %c17 = arith.constant 17 : index
    %4 = vector.load %arg8[%c0_5, %c0_6, %c17] : memref<2x16x290xf32, #tpu.memory_space<vmem>>, vector<1x8x256xf32>
    %5 = vector.shape_cast %4 : vector<1x8x256xf32> to vector<8x256xf32>
    %6 = vector.shape_cast %3 : vector<8x256xf32> to vector<1x8x256xf32>
    tpu.vector_store %arg8[%c0_5, %c0_6, %c17], %6 {strides = array<i32>} : memref<2x16x290xf32, #tpu.memory_space<vmem>>, vector<1x8x256xf32>,
    %c0_7 = arith.constant 0 : index
    %c0_8 = arith.constant 0 : index
    %c0_9 = arith.constant 0 : index
    %7 = vector.load %arg1[%c0_7, %c0_8, %c0_9] : memref<2x8x1xf32, #tpu.memory_space<vmem>>, vector<1x8x1xf32>
    %8 = vector.shape_cast %7 : vector<1x8x1xf32> to vector<8x1xf32>
    %9 = vector.shape_cast %8 : vector<8x1xf32> to vector<8x1xf32>
    %10 = vector.broadcast %9 : vector<8x1xf32> to vector<8x256xf32>
    %c0_10 = arith.constant 0 : index
    %c8 = arith.constant 8 : index
    %c17_11 = arith.constant 17 : index
    %11 = vector.load %arg8[%c0_10, %c8, %c17_11] : memref<2x16x290xf32, #tpu.memory_space<vmem>>, vector<1x8x256xf32>
    %12 = vector.shape_cast %11 : vector<1x8x256xf32> to vector<8x256xf32>
    %13 = vector.shape_cast %10 : vector<8x256xf32> to vector<1x8x256xf32>
    tpu.vector_store %arg8[%c0_10, %c8, %c17_11], %13 {strides = array<i32>} : memref<2x16x290xf32, #tpu.memory_space<vmem>>, vector<1x8x256xf32>,
    %c1 = arith.constant 1 : index
    %c0_12 = arith.constant 0 : index
    %c0_13 = arith.constant 0 : index
    %14 = vector.load %arg0[%c1, %c0_12, %c0_13] : memref<2x8x256xf32, #tpu.memory_space<vmem>>, vector<1x8x256xf32>
    %15 = vector.shape_cast %14 : vector<1x8x256xf32> to vector<8x256xf32>
    %c1_14 = arith.constant 1 : index
    %c0_15 = arith.constant 0 : index
    %c17_16 = arith.constant 17 : index
    %16 = vector.load %arg8[%c1_14, %c0_15, %c17_16] : memref<2x16x290xf32, #tpu.memory_space<vmem>>, vector<1x8x256xf32>
    %17 = vector.shape_cast %16 : vector<1x8x256xf32> to vector<8x256xf32>
    %18 = vector.shape_cast %15 : vector<8x256xf32> to vector<1x8x256xf32>
    tpu.vector_store %arg8[%c1_14, %c0_15, %c17_16], %18 {strides = array<i32>} : memref<2x16x290xf32, #tpu.memory_space<vmem>>, vector<1x8x256xf32>,
    %c1_17 = arith.constant 1 : index
    %c0_18 = arith.constant 0 : index
    %c0_19 = arith.constant 0 : index
    %19 = vector.load %arg1[%c1_17, %c0_18, %c0_19] : memref<2x8x1xf32, #tpu.memory_space<vmem>>, vector<1x8x1xf32>
    %20 = vector.shape_cast %19 : vector<1x8x1xf32> to vector<8x1xf32>
    %21 = vector.shape_cast %20 : vector<8x1xf32> to vector<8x1xf32>
    %22 = vector.broadcast %21 : vector<8x1xf32> to vector<8x256xf32>
    %c1_20 = arith.constant 1 : index
    %c8_21 = arith.constant 8 : index
    %c17_22 = arith.constant 17 : index
    %23 = vector.load %arg8[%c1_20, %c8_21, %c17_22] : memref<2x16x290xf32, #tpu.memory_space<vmem>>, vector<1x8x256xf32>
    %24 = vector.shape_cast %23 : vector<1x8x256xf32> to vector<8x256xf32>
    %25 = vector.shape_cast %22 : vector<8x256xf32> to vector<1x8x256xf32>
    tpu.vector_store %arg8[%c1_20, %c8_21, %c17_22], %25 {strides = array<i32>} : memref<2x16x290xf32, #tpu.memory_space<vmem>>, vector<1x8x256xf32>,
    %26 = tpu.iota {dimensions = array<i32: 1>} : vector<1x256xi32>
    %c15_i32 = arith.constant 15 : i32
    %27 = vector.broadcast %c15_i32 : i32 to vector<1x256xi32>
    %28 = arith.andi %26, %27 : vector<1x256xi32>
    %c0_i32 = arith.constant 0 : i32
    %29 = vector.broadcast %c0_i32 : i32 to vector<1x256xi32>
    %30 = arith.cmpi sgt, %28, %29 : vector<1x256xi32>
    %c15_i32_23 = arith.constant 15 : i32
    %31 = vector.broadcast %c15_i32_23 : i32 to vector<1x256xi32>
    %32 = arith.cmpi slt, %28, %31 : vector<1x256xi32>
    %c0_24 = arith.constant 0 : index
    %c0_25 = arith.constant 0 : index
    %c0_26 = arith.constant 0 : index
    %33 = vector.load %arg8[%c0_24, %c0_25, %c0_26] : memref<2x16x290xf32, #tpu.memory_space<vmem>>, vector<1x16x256xf32>
    %34 = vector.shape_cast %33 : vector<1x16x256xf32> to vector<16x256xf32>
    %cst_27 = arith.constant 0.000000e+00 : f32
    %35 = vector.shape_cast %30 : vector<1x256xi1> to vector<1x256xi1>
    %36 = vector.broadcast %35 : vector<1x256xi1> to vector<16x256xi1>
    %37 = vector.broadcast %cst_27 : f32 to vector<16x256xf32>
    %38 = arith.select %36, %34, %37 : vector<16x256xi1>, vector<16x256xf32>
    %c0_28 = arith.constant 0 : index
    %c0_29 = arith.constant 0 : index
    %39 = vector.load %arg9[%c0_28, %c0_29] : memref<144x512xf32, #tpu.memory_space<vmem>>, vector<16x256xf32>
    tpu.vector_store %arg9[%c0_28, %c0_29], %38 {strides = array<i32>} : memref<144x512xf32, #tpu.memory_space<vmem>>, vector<16x256xf32>,
    %c0_30 = arith.constant 0 : index
    %c0_31 = arith.constant 0 : index
    %c1_32 = arith.constant 1 : index
    %40 = vector.load %arg8[%c0_30, %c0_31, %c1_32] : memref<2x16x290xf32, #tpu.memory_space<vmem>>, vector<1x16x256xf32>
    %41 = vector.shape_cast %40 : vector<1x16x256xf32> to vector<16x256xf32>
    %c16 = arith.constant 16 : index
    %c0_33 = arith.constant 0 : index
    %42 = vector.load %arg9[%c16, %c0_33] : memref<144x512xf32, #tpu.memory_space<vmem>>, vector<16x256xf32>
    tpu.vector_store %arg9[%c16, %c0_33], %41 {strides = array<i32>} : memref<144x512xf32, #tpu.memory_space<vmem>>, vector<16x256xf32>,
    %c0_34 = arith.constant 0 : index
    %c0_35 = arith.constant 0 : index
    %c2 = arith.constant 2 : index
    %43 = vector.load %arg8[%c0_34, %c0_35, %c2] : memref<2x16x290xf32, #tpu.memory_space<vmem>>, vector<1x16x256xf32>
    %44 = vector.shape_cast %43 : vector<1x16x256xf32> to vector<16x256xf32>
    %cst_36 = arith.constant 0.000000e+00 : f32
    %45 = vector.shape_cast %32 : vector<1x256xi1> to vector<1x256xi1>
    %46 = vector.broadcast %45 : vector<1x256xi1> to vector<16x256xi1>
    %47 = vector.broadcast %cst_36 : f32 to vector<16x256xf32>
    %48 = arith.select %46, %44, %47 : vector<16x256xi1>, vector<16x256xf32>
    %c32 = arith.constant 32 : index
    %c0_37 = arith.constant 0 : index
    %49 = vector.load %arg9[%c32, %c0_37] : memref<144x512xf32, #tpu.memory_space<vmem>>, vector<16x256xf32>
    tpu.vector_store %arg9[%c32, %c0_37], %48 {strides = array<i32>} : memref<144x512xf32, #tpu.memory_space<vmem>>, vector<16x256xf32>,
    %c0_38 = arith.constant 0 : index
    %c0_39 = arith.constant 0 : index
    %c16_40 = arith.constant 16 : index
    %50 = vector.load %arg8[%c0_38, %c0_39, %c16_40] : memref<2x16x290xf32, #tpu.memory_space<vmem>>, vector<1x16x256xf32>
    %51 = vector.shape_cast %50 : vector<1x16x256xf32> to vector<16x256xf32>
    %cst_41 = arith.constant 0.000000e+00 : f32
    %52 = vector.shape_cast %30 : vector<1x256xi1> to vector<1x256xi1>
    %53 = vector.broadcast %52 : vector<1x256xi1> to vector<16x256xi1>
    %54 = vector.broadcast %cst_41 : f32 to vector<16x256xf32>
    %55 = arith.select %53, %51, %54 : vector<16x256xi1>, vector<16x256xf32>
    %c48 = arith.constant 48 : index
    %c0_42 = arith.constant 0 : index
    %56 = vector.load %arg9[%c48, %c0_42] : memref<144x512xf32, #tpu.memory_space<vmem>>, vector<16x256xf32>
    tpu.vector_store %arg9[%c48, %c0_42], %55 {strides = array<i32>} : memref<144x512xf32, #tpu.memory_space<vmem>>, vector<16x256xf32>,
    %c0_43 = arith.constant 0 : index
    %c0_44 = arith.constant 0 : index
    %c17_45 = arith.constant 17 : index
    %57 = vector.load %arg8[%c0_43, %c0_44, %c17_45] : memref<2x16x290xf32, #tpu.memory_space<vmem>>, vector<1x16x256xf32>
    %58 = vector.shape_cast %57 : vector<1x16x256xf32> to vector<16x256xf32>
    %c64 = arith.constant 64 : index
    %c0_46 = arith.constant 0 : index
    %59 = vector.load %arg9[%c64, %c0_46] : memref<144x512xf32, #tpu.memory_space<vmem>>, vector<16x256xf32>
    tpu.vector_store %arg9[%c64, %c0_46], %58 {strides = array<i32>} : memref<144x512xf32, #tpu.memory_space<vmem>>, vector<16x256xf32>,
    %c0_47 = arith.constant 0 : index
    %c0_48 = arith.constant 0 : index
    %c18 = arith.constant 18 : index
    %60 = vector.load %arg8[%c0_47, %c0_48, %c18] : memref<2x16x290xf32, #tpu.memory_space<vmem>>, vector<1x16x256xf32>
    %61 = vector.shape_cast %60 : vector<1x16x256xf32> to vector<16x256xf32>
    %cst_49 = arith.constant 0.000000e+00 : f32
    %62 = vector.shape_cast %32 : vector<1x256xi1> to vector<1x256xi1>
    %63 = vector.broadcast %62 : vector<1x256xi1> to vector<16x256xi1>
    %64 = vector.broadcast %cst_49 : f32 to vector<16x256xf32>
    %65 = arith.select %63, %61, %64 : vector<16x256xi1>, vector<16x256xf32>
    %c80 = arith.constant 80 : index
    %c0_50 = arith.constant 0 : index
    %66 = vector.load %arg9[%c80, %c0_50] : memref<144x512xf32, #tpu.memory_space<vmem>>, vector<16x256xf32>
    tpu.vector_store %arg9[%c80, %c0_50], %65 {strides = array<i32>} : memref<144x512xf32, #tpu.memory_space<vmem>>, vector<16x256xf32>,
    %c0_51 = arith.constant 0 : index
    %c0_52 = arith.constant 0 : index
    %c32_53 = arith.constant 32 : index
    %67 = vector.load %arg8[%c0_51, %c0_52, %c32_53] : memref<2x16x290xf32, #tpu.memory_space<vmem>>, vector<1x16x256xf32>
    %68 = vector.shape_cast %67 : vector<1x16x256xf32> to vector<16x256xf32>
    %cst_54 = arith.constant 0.000000e+00 : f32
    %69 = vector.shape_cast %30 : vector<1x256xi1> to vector<1x256xi1>
    %70 = vector.broadcast %69 : vector<1x256xi1> to vector<16x256xi1>
    %71 = vector.broadcast %cst_54 : f32 to vector<16x256xf32>
    %72 = arith.select %70, %68, %71 : vector<16x256xi1>, vector<16x256xf32>
    %c96 = arith.constant 96 : index
    %c0_55 = arith.constant 0 : index
    %73 = vector.load %arg9[%c96, %c0_55] : memref<144x512xf32, #tpu.memory_space<vmem>>, vector<16x256xf32>
    tpu.vector_store %arg9[%c96, %c0_55], %72 {strides = array<i32>} : memref<144x512xf32, #tpu.memory_space<vmem>>, vector<16x256xf32>,
    %c0_56 = arith.constant 0 : index
    %c0_57 = arith.constant 0 : index
    %c33 = arith.constant 33 : index
    %74 = vector.load %arg8[%c0_56, %c0_57, %c33] : memref<2x16x290xf32, #tpu.memory_space<vmem>>, vector<1x16x256xf32>
    %75 = vector.shape_cast %74 : vector<1x16x256xf32> to vector<16x256xf32>
    %c112 = arith.constant 112 : index
    %c0_58 = arith.constant 0 : index
    %76 = vector.load %arg9[%c112, %c0_58] : memref<144x512xf32, #tpu.memory_space<vmem>>, vector<16x256xf32>
    tpu.vector_store %arg9[%c112, %c0_58], %75 {strides = array<i32>} : memref<144x512xf32, #tpu.memory_space<vmem>>, vector<16x256xf32>,
    %c0_59 = arith.constant 0 : index
    %c0_60 = arith.constant 0 : index
    %c34 = arith.constant 34 : index
    %77 = vector.load %arg8[%c0_59, %c0_60, %c34] : memref<2x16x290xf32, #tpu.memory_space<vmem>>, vector<1x16x256xf32>
    %78 = vector.shape_cast %77 : vector<1x16x256xf32> to vector<16x256xf32>
    %cst_61 = arith.constant 0.000000e+00 : f32
    %79 = vector.shape_cast %32 : vector<1x256xi1> to vector<1x256xi1>
    %80 = vector.broadcast %79 : vector<1x256xi1> to vector<16x256xi1>
    %81 = vector.broadcast %cst_61 : f32 to vector<16x256xf32>
    %82 = arith.select %80, %78, %81 : vector<16x256xi1>, vector<16x256xf32>
    %c128 = arith.constant 128 : index
    %c0_62 = arith.constant 0 : index
    %83 = vector.load %arg9[%c128, %c0_62] : memref<144x512xf32, #tpu.memory_space<vmem>>, vector<16x256xf32>
    tpu.vector_store %arg9[%c128, %c0_62], %82 {strides = array<i32>} : memref<144x512xf32, #tpu.memory_space<vmem>>, vector<16x256xf32>,
    %c1_63 = arith.constant 1 : index
    %c0_64 = arith.constant 0 : index
    %c0_65 = arith.constant 0 : index
    %84 = vector.load %arg8[%c1_63, %c0_64, %c0_65] : memref<2x16x290xf32, #tpu.memory_space<vmem>>, vector<1x16x256xf32>
    %85 = vector.shape_cast %84 : vector<1x16x256xf32> to vector<16x256xf32>
    %cst_66 = arith.constant 0.000000e+00 : f32
    %86 = vector.shape_cast %30 : vector<1x256xi1> to vector<1x256xi1>
    %87 = vector.broadcast %86 : vector<1x256xi1> to vector<16x256xi1>
    %88 = vector.broadcast %cst_66 : f32 to vector<16x256xf32>
    %89 = arith.select %87, %85, %88 : vector<16x256xi1>, vector<16x256xf32>
    %c0_67 = arith.constant 0 : index
    %c256 = arith.constant 256 : index
    %90 = vector.load %arg9[%c0_67, %c256] : memref<144x512xf32, #tpu.memory_space<vmem>>, vector<16x256xf32>
    tpu.vector_store %arg9[%c0_67, %c256], %89 {strides = array<i32>} : memref<144x512xf32, #tpu.memory_space<vmem>>, vector<16x256xf32>,
    %c1_68 = arith.constant 1 : index
    %c0_69 = arith.constant 0 : index
    %c1_70 = arith.constant 1 : index
    %91 = vector.load %arg8[%c1_68, %c0_69, %c1_70] : memref<2x16x290xf32, #tpu.memory_space<vmem>>, vector<1x16x256xf32>
    %92 = vector.shape_cast %91 : vector<1x16x256xf32> to vector<16x256xf32>
    %c16_71 = arith.constant 16 : index
    %c256_72 = arith.constant 256 : index
    %93 = vector.load %arg9[%c16_71, %c256_72] : memref<144x512xf32, #tpu.memory_space<vmem>>, vector<16x256xf32>
    tpu.vector_store %arg9[%c16_71, %c256_72], %92 {strides = array<i32>} : memref<144x512xf32, #tpu.memory_space<vmem>>, vector<16x256xf32>,
    %c1_73 = arith.constant 1 : index
    %c0_74 = arith.constant 0 : index
    %c2_75 = arith.constant 2 : index
    %94 = vector.load %arg8[%c1_73, %c0_74, %c2_75] : memref<2x16x290xf32, #tpu.memory_space<vmem>>, vector<1x16x256xf32>
    %95 = vector.shape_cast %94 : vector<1x16x256xf32> to vector<16x256xf32>
    %cst_76 = arith.constant 0.000000e+00 : f32
    %96 = vector.shape_cast %32 : vector<1x256xi1> to vector<1x256xi1>
    %97 = vector.broadcast %96 : vector<1x256xi1> to vector<16x256xi1>
    %98 = vector.broadcast %cst_76 : f32 to vector<16x256xf32>
    %99 = arith.select %97, %95, %98 : vector<16x256xi1>, vector<16x256xf32>
    %c32_77 = arith.constant 32 : index
    %c256_78 = arith.constant 256 : index
    %100 = vector.load %arg9[%c32_77, %c256_78] : memref<144x512xf32, #tpu.memory_space<vmem>>, vector<16x256xf32>
    tpu.vector_store %arg9[%c32_77, %c256_78], %99 {strides = array<i32>} : memref<144x512xf32, #tpu.memory_space<vmem>>, vector<16x256xf32>,
    %c1_79 = arith.constant 1 : index
    %c0_80 = arith.constant 0 : index
    %c16_81 = arith.constant 16 : index
    %101 = vector.load %arg8[%c1_79, %c0_80, %c16_81] : memref<2x16x290xf32, #tpu.memory_space<vmem>>, vector<1x16x256xf32>
    %102 = vector.shape_cast %101 : vector<1x16x256xf32> to vector<16x256xf32>
    %cst_82 = arith.constant 0.000000e+00 : f32
    %103 = vector.shape_cast %30 : vector<1x256xi1> to vector<1x256xi1>
    %104 = vector.broadcast %103 : vector<1x256xi1> to vector<16x256xi1>
    %105 = vector.broadcast %cst_82 : f32 to vector<16x256xf32>
    %106 = arith.select %104, %102, %105 : vector<16x256xi1>, vector<16x256xf32>
    %c48_83 = arith.constant 48 : index
    %c256_84 = arith.constant 256 : index
    %107 = vector.load %arg9[%c48_83, %c256_84] : memref<144x512xf32, #tpu.memory_space<vmem>>, vector<16x256xf32>
    tpu.vector_store %arg9[%c48_83, %c256_84], %106 {strides = array<i32>} : memref<144x512xf32, #tpu.memory_space<vmem>>, vector<16x256xf32>,
    %c1_85 = arith.constant 1 : index
    %c0_86 = arith.constant 0 : index
    %c17_87 = arith.constant 17 : index
    %108 = vector.load %arg8[%c1_85, %c0_86, %c17_87] : memref<2x16x290xf32, #tpu.memory_space<vmem>>, vector<1x16x256xf32>
    %109 = vector.shape_cast %108 : vector<1x16x256xf32> to vector<16x256xf32>
    %c64_88 = arith.constant 64 : index
    %c256_89 = arith.constant 256 : index
    %110 = vector.load %arg9[%c64_88, %c256_89] : memref<144x512xf32, #tpu.memory_space<vmem>>, vector<16x256xf32>
    tpu.vector_store %arg9[%c64_88, %c256_89], %109 {strides = array<i32>} : memref<144x512xf32, #tpu.memory_space<vmem>>, vector<16x256xf32>,
    %c1_90 = arith.constant 1 : index
    %c0_91 = arith.constant 0 : index
    %c18_92 = arith.constant 18 : index
    %111 = vector.load %arg8[%c1_90, %c0_91, %c18_92] : memref<2x16x290xf32, #tpu.memory_space<vmem>>, vector<1x16x256xf32>
    %112 = vector.shape_cast %111 : vector<1x16x256xf32> to vector<16x256xf32>
    %cst_93 = arith.constant 0.000000e+00 : f32
    %113 = vector.shape_cast %32 : vector<1x256xi1> to vector<1x256xi1>
    %114 = vector.broadcast %113 : vector<1x256xi1> to vector<16x256xi1>
    %115 = vector.broadcast %cst_93 : f32 to vector<16x256xf32>
    %116 = arith.select %114, %112, %115 : vector<16x256xi1>, vector<16x256xf32>
    %c80_94 = arith.constant 80 : index
    %c256_95 = arith.constant 256 : index
    %117 = vector.load %arg9[%c80_94, %c256_95] : memref<144x512xf32, #tpu.memory_space<vmem>>, vector<16x256xf32>
    tpu.vector_store %arg9[%c80_94, %c256_95], %116 {strides = array<i32>} : memref<144x512xf32, #tpu.memory_space<vmem>>, vector<16x256xf32>,
    %c1_96 = arith.constant 1 : index
    %c0_97 = arith.constant 0 : index
    %c32_98 = arith.constant 32 : index
    %118 = vector.load %arg8[%c1_96, %c0_97, %c32_98] : memref<2x16x290xf32, #tpu.memory_space<vmem>>, vector<1x16x256xf32>
    %119 = vector.shape_cast %118 : vector<1x16x256xf32> to vector<16x256xf32>
    %cst_99 = arith.constant 0.000000e+00 : f32
    %120 = vector.shape_cast %30 : vector<1x256xi1> to vector<1x256xi1>
    %121 = vector.broadcast %120 : vector<1x256xi1> to vector<16x256xi1>
    %122 = vector.broadcast %cst_99 : f32 to vector<16x256xf32>
    %123 = arith.select %121, %119, %122 : vector<16x256xi1>, vector<16x256xf32>
    %c96_100 = arith.constant 96 : index
    %c256_101 = arith.constant 256 : index
    %124 = vector.load %arg9[%c96_100, %c256_101] : memref<144x512xf32, #tpu.memory_space<vmem>>, vector<16x256xf32>
    tpu.vector_store %arg9[%c96_100, %c256_101], %123 {strides = array<i32>} : memref<144x512xf32, #tpu.memory_space<vmem>>, vector<16x256xf32>,
    %c1_102 = arith.constant 1 : index
    %c0_103 = arith.constant 0 : index
    %c33_104 = arith.constant 33 : index
    %125 = vector.load %arg8[%c1_102, %c0_103, %c33_104] : memref<2x16x290xf32, #tpu.memory_space<vmem>>, vector<1x16x256xf32>
    %126 = vector.shape_cast %125 : vector<1x16x256xf32> to vector<16x256xf32>
    %c112_105 = arith.constant 112 : index
    %c256_106 = arith.constant 256 : index
    %127 = vector.load %arg9[%c112_105, %c256_106] : memref<144x512xf32, #tpu.memory_space<vmem>>, vector<16x256xf32>
    tpu.vector_store %arg9[%c112_105, %c256_106], %126 {strides = array<i32>} : memref<144x512xf32, #tpu.memory_space<vmem>>, vector<16x256xf32>,
    %c1_107 = arith.constant 1 : index
    %c0_108 = arith.constant 0 : index
    %c34_109 = arith.constant 34 : index
    %128 = vector.load %arg8[%c1_107, %c0_108, %c34_109] : memref<2x16x290xf32, #tpu.memory_space<vmem>>, vector<1x16x256xf32>
    %129 = vector.shape_cast %128 : vector<1x16x256xf32> to vector<16x256xf32>
    %cst_110 = arith.constant 0.000000e+00 : f32
    %130 = vector.shape_cast %32 : vector<1x256xi1> to vector<1x256xi1>
    %131 = vector.broadcast %130 : vector<1x256xi1> to vector<16x256xi1>
    %132 = vector.broadcast %cst_110 : f32 to vector<16x256xf32>
    %133 = arith.select %131, %129, %132 : vector<16x256xi1>, vector<16x256xf32>
    %c128_111 = arith.constant 128 : index
    %c256_112 = arith.constant 256 : index
    %134 = vector.load %arg9[%c128_111, %c256_112] : memref<144x512xf32, #tpu.memory_space<vmem>>, vector<16x256xf32>
    tpu.vector_store %arg9[%c128_111, %c256_112], %133 {strides = array<i32>} : memref<144x512xf32, #tpu.memory_space<vmem>>, vector<16x256xf32>,
    %c0_113 = arith.constant 0 : index
    %c0_114 = arith.constant 0 : index
    %135 = vector.load %arg3[%c0_113, %c0_114] : memref<8x144xf32, #tpu.memory_space<vmem>>, vector<8x144xf32>
    %c0_115 = arith.constant 0 : index
    %c0_116 = arith.constant 0 : index
    %136 = vector.load %arg9[%c0_115, %c0_116] : memref<144x512xf32, #tpu.memory_space<vmem>>, vector<144x512xf32>
    %cst_117 = arith.constant dense<0.000000e+00> : vector<8x512xf32>
    %137 = tpu.matmul %135, %136, %cst_117 {dimension_numbers = #tpu.dot_dimension_numbers<[1], [0], [0], [1], [0, 0, 1, 1], [], []>} : vector<8x144xf32>, vector<144x512xf32>, vector<8x512xf32> -> vector<8x512xf32>
    %c0_118 = arith.constant 0 : index
    %c0_119 = arith.constant 0 : index
    %138 = vector.load %arg4[%c0_118, %c0_119] : memref<8x1xf32, #tpu.memory_space<vmem>>, vector<8x1xf32>
    %139 = vector.broadcast %138 : vector<8x1xf32> to vector<8x512xf32>
    %140 = arith.addf %137, %139 : vector<8x512xf32>
    %cst_120 = arith.constant dense<0.000000e+00> : vector<8xf32>
    %141 = vector.multi_reduction <add>, %140, %cst_120 [1] : vector<8x512xf32> to vector<8xf32>
    %142 = vector.shape_cast %141 : vector<8xf32> to vector<8x1xf32>
    %cst_121 = arith.constant 0.001953125 : f32
    %143 = vector.broadcast %cst_121 : f32 to vector<8x1xf32>
    %144 = arith.mulf %142, %143 : vector<8x1xf32>
    %145 = arith.mulf %140, %140 : vector<8x512xf32>
    %cst_122 = arith.constant dense<0.000000e+00> : vector<8xf32>
    %146 = vector.multi_reduction <add>, %145, %cst_122 [1] : vector<8x512xf32> to vector<8xf32>
    %147 = vector.shape_cast %146 : vector<8xf32> to vector<8x1xf32>
    %cst_123 = arith.constant 0.001953125 : f32
    %148 = vector.broadcast %cst_123 : f32 to vector<8x1xf32>
    %149 = arith.mulf %147, %148 : vector<8x1xf32>
    %150 = arith.mulf %144, %144 : vector<8x1xf32>
    %151 = arith.subf %149, %150 : vector<8x1xf32>
    %c0_124 = arith.constant 0 : index
    %c0_125 = arith.constant 0 : index
    %152 = vector.load %arg5[%c0_124, %c0_125] : memref<8x1xf32, #tpu.memory_space<vmem>>, vector<8x1xf32>
    %cst_126 = arith.constant 9.99999974E-6 : f32
    %153 = vector.broadcast %cst_126 : f32 to vector<8x1xf32>
    %154 = arith.addf %151, %153 : vector<8x1xf32>
    %155 = math.rsqrt %154 : vector<8x1xf32>
    %156 = arith.mulf %152, %155 : vector<8x1xf32>
    %c0_127 = arith.constant 0 : index
    %c0_128 = arith.constant 0 : index
    %157 = vector.load %arg6[%c0_127, %c0_128] : memref<8x1xf32, #tpu.memory_space<vmem>>, vector<8x1xf32>
    %158 = arith.mulf %144, %156 : vector<8x1xf32>
    %159 = arith.subf %157, %158 : vector<8x1xf32>
    %160 = vector.broadcast %156 : vector<8x1xf32> to vector<8x512xf32>
    %161 = arith.mulf %140, %160 : vector<8x512xf32>
    %162 = vector.broadcast %159 : vector<8x1xf32> to vector<8x512xf32>
    %163 = arith.addf %161, %162 : vector<8x512xf32>
    %cst_129 = arith.constant 2.000000e-01 : f32
    %164 = vector.broadcast %cst_129 : f32 to vector<8x512xf32>
    %165 = arith.mulf %164, %163 : vector<8x512xf32>
    %166 = arith.maximumf %163, %165 : vector<8x512xf32>
    %c0_130 = arith.constant 0 : index
    %c0_131 = arith.constant 0 : index
    %c0_132 = arith.constant 0 : index
    %167 = vector.load %arg2[%c0_130, %c0_131, %c0_132] : memref<2x4x256xf32, #tpu.memory_space<vmem>>, vector<1x4x256xf32>
    %168 = vector.shape_cast %167 : vector<1x4x256xf32> to vector<4x256xf32>
    %cst_133 = arith.constant dense<0.000000e+00> : vector<256xf32>
    %169 = vector.multi_reduction <add>, %168, %cst_133 [0] : vector<4x256xf32> to vector<256xf32>
    %170 = vector.shape_cast %169 : vector<256xf32> to vector<1x256xf32>
    %cst_134 = arith.constant 0.000000e+00 : f32
    %cst_135 = arith.constant 1.000000e+00 : f32
    %171 = vector.broadcast %cst_134 : f32 to vector<1x256xf32>
    %172 = arith.maximumf %171, %170 : vector<1x256xf32>
    %173 = vector.broadcast %cst_135 : f32 to vector<1x256xf32>
    %174 = arith.minimumf %173, %172 : vector<1x256xf32>
    %175 = vector.extract_strided_slice %166 {offsets = [0, 0], sizes = [8, 256], strides = [1, 1]} : vector<8x512xf32> to vector<8x256xf32>
    %176 = vector.broadcast %174 : vector<1x256xf32> to vector<8x256xf32>
    %177 = arith.mulf %175, %176 : vector<8x256xf32>
    %c0_136 = arith.constant 0 : index
    %c0_137 = arith.constant 0 : index
    %c0_138 = arith.constant 0 : index
    %178 = vector.load %arg7[%c0_136, %c0_137, %c0_138] : memref<2x8x256xf32, #tpu.memory_space<vmem>>, vector<1x8x256xf32>
    %179 = vector.shape_cast %178 : vector<1x8x256xf32> to vector<8x256xf32>
    %180 = vector.shape_cast %177 : vector<8x256xf32> to vector<1x8x256xf32>
    tpu.vector_store %arg7[%c0_136, %c0_137, %c0_138], %180 {strides = array<i32>} : memref<2x8x256xf32, #tpu.memory_space<vmem>>, vector<1x8x256xf32>,
    %c1_139 = arith.constant 1 : index
    %c0_140 = arith.constant 0 : index
    %c0_141 = arith.constant 0 : index
    %181 = vector.load %arg2[%c1_139, %c0_140, %c0_141] : memref<2x4x256xf32, #tpu.memory_space<vmem>>, vector<1x4x256xf32>
    %182 = vector.shape_cast %181 : vector<1x4x256xf32> to vector<4x256xf32>
    %cst_142 = arith.constant dense<0.000000e+00> : vector<256xf32>
    %183 = vector.multi_reduction <add>, %182, %cst_142 [0] : vector<4x256xf32> to vector<256xf32>
    %184 = vector.shape_cast %183 : vector<256xf32> to vector<1x256xf32>
    %cst_143 = arith.constant 0.000000e+00 : f32
    %cst_144 = arith.constant 1.000000e+00 : f32
    %185 = vector.broadcast %cst_143 : f32 to vector<1x256xf32>
    %186 = arith.maximumf %185, %184 : vector<1x256xf32>
    %187 = vector.broadcast %cst_144 : f32 to vector<1x256xf32>
    %188 = arith.minimumf %187, %186 : vector<1x256xf32>
    %189 = vector.extract_strided_slice %166 {offsets = [0, 256], sizes = [8, 256], strides = [1, 1]} : vector<8x512xf32> to vector<8x256xf32>
    %190 = vector.broadcast %188 : vector<1x256xf32> to vector<8x256xf32>
    %191 = arith.mulf %189, %190 : vector<8x256xf32>
    %c1_145 = arith.constant 1 : index
    %c0_146 = arith.constant 0 : index
    %c0_147 = arith.constant 0 : index
    %192 = vector.load %arg7[%c1_145, %c0_146, %c0_147] : memref<2x8x256xf32, #tpu.memory_space<vmem>>, vector<1x8x256xf32>
    %193 = vector.shape_cast %192 : vector<1x8x256xf32> to vector<8x256xf32>
    %194 = vector.shape_cast %191 : vector<8x256xf32> to vector<1x8x256xf32>
    tpu.vector_store %arg7[%c1_145, %c0_146, %c0_147], %194 {strides = array<i32>} : memref<2x8x256xf32, #tpu.memory_space<vmem>>, vector<1x8x256xf32>,
    return
  }
}

</mosaic_0001>

<llo_original>
// kernel: key_mul_d.1
$region0: #{key_mul_d.1}
  #allocation0 [shape = 'u32[]', space=smem, size = 0x4, offset = 0x4, fixed_abs, tag = 'smem constant byte address 0x4 - core index']
  #allocation1 [shape = 'u32[144,128]{1,0:T(1,128)}', space=vmem, size = 0x12000, scoped, tag = 'internal scratch']
  #allocation2 [shape = 'f32[2,16,290]{2,1,0:T(8,128)}', space=vmem, size = 0xc000, scoped, tag = 'scratch operand']
  #allocation3 [shape = 'f32[144,512]{1,0:T(8,128)}', space=vmem, size = 0x48000, scoped, tag = 'scratch operand']
  %s0 = inlined_call_operand.vmem [shape: f32[2,8,256], index: 0, kind: input, shape index: {}]
  %s1 = inlined_call_operand.vmem [shape: f32[2,8,1], index: 1, kind: input, shape index: {}]
  %s2 = inlined_call_operand.vmem [shape: f32[2,4,256], index: 2, kind: input, shape index: {}]
  %s3 = inlined_call_operand.vmem [shape: f32[8,144], index: 3, kind: input, shape index: {}]
  %s4 = inlined_call_operand.vmem [shape: f32[8,1], index: 4, kind: input, shape index: {}]
  %s5 = inlined_call_operand.vmem [shape: f32[8,1], index: 5, kind: input, shape index: {}]
  %s6 = inlined_call_operand.vmem [shape: f32[8,1], index: 6, kind: input, shape index: {}]
  %s7 = inlined_call_operand.vmem [shape: f32[2,8,256], index: 7, kind: output, shape index: {}]
  %s8 = sld [smem:[#allocation0]]
  $region38: #{key_mul_d.1} parent=0
    _
  %s10 = ssub.s32 1, %s8
  %s11 = scalar_select 0, %s10, %s8
  // Predicated region
  $region2: #{key_mul_d.1} parent=0 // pred_check
    _
  $region3: #{key_mul_d.1} parent=0 // pred_check_branch
    %13 = sbr.rel (0) target = $region5
  $region4: #{key_mul_d.1} parent=0 // pred_region
    _
  $region5: #{key_mul_d.1} parent=0 // pred_fallthru
    _
  // Predicated region
  $region6: #{key_mul_d.1} parent=0 // pred_check
    _
  $region7: #{key_mul_d.1} parent=0 // pred_check_branch
    %15 = sbr.rel (0) target = $region9
  $region8: #{key_mul_d.1} parent=0 // pred_region
    _
  $region9: #{key_mul_d.1} parent=0 // pred_fallthru
    _
  // Predicated region
  $region10: #{key_mul_d.1} parent=0 // pred_check
    _
  $region11: #{key_mul_d.1} parent=0 // pred_check_branch
    %17 = sbr.rel (0) target = $region13
  $region12: #{key_mul_d.1} parent=0 // pred_region
    _
  $region13: #{key_mul_d.1} parent=0 // pred_fallthru
    _
  // Predicated region
  $region14: #{key_mul_d.1} parent=0 // pred_check
    _
  $region15: #{key_mul_d.1} parent=0 // pred_check_branch
    %19 = sbr.rel (0) target = $region17
  $region16: #{key_mul_d.1} parent=0 // pred_region
    _
  $region17: #{key_mul_d.1} parent=0 // pred_fallthru
    _
  // Predicated region
  $region18: #{key_mul_d.1} parent=0 // pred_check
    _
  $region19: #{key_mul_d.1} parent=0 // pred_check_branch
    %21 = sbr.rel (0) target = $region21
  $region20: #{key_mul_d.1} parent=0 // pred_region
    _
  $region21: #{key_mul_d.1} parent=0 // pred_fallthru
    _
  // Predicated region
  $region22: #{key_mul_d.1} parent=0 // pred_check
    _
  $region23: #{key_mul_d.1} parent=0 // pred_check_branch
    %23 = sbr.rel (0) target = $region25
  $region24: #{key_mul_d.1} parent=0 // pred_region
    _
  $region25: #{key_mul_d.1} parent=0 // pred_fallthru
    _
  // Predicated region
  $region26: #{key_mul_d.1} parent=0 // pred_check
    _
  $region27: #{key_mul_d.1} parent=0 // pred_check_branch
    %25 = sbr.rel (0) target = $region29
  $region28: #{key_mul_d.1} parent=0 // pred_region
    _
  $region29: #{key_mul_d.1} parent=0 // pred_fallthru
    _
  %26 = vst [vmem:[#allocation2] sm:$0xff] 0.0
  %27 = vst [vmem:[#allocation2 + $0x8] sm:$0xff] 0.0
  %vm28 = vcmask 277504
  %29 = vst.msk [vmem:[#allocation2 + $0x10] sm:$0xff] %vm28, 0.0
  %30 = vst [vmem:[#allocation2 + $0x18] sm:$0xff] 0.0
  %31 = vst [vmem:[#allocation2 + $0x20] sm:$0xff] 0.0
  %32 = vst.msk [vmem:[#allocation2 + $0x28] sm:$0xff] %vm28, 0.0
  %33 = vst [vmem:[#allocation2 + $0x30] sm:$0xff] 0.0
  %34 = vst [vmem:[#allocation2 + $0x38] sm:$0xff] 0.0
  %35 = vst.msk [vmem:[#allocation2 + $0x40] sm:$0xff] %vm28, 0.0
  %36 = vst [vmem:[#allocation2 + $0x48] sm:$0xff] 0.0
  %37 = vst [vmem:[#allocation2 + $0x50] sm:$0xff] 0.0
  %38 = vst.msk [vmem:[#allocation2 + $0x58] sm:$0xff] %vm28, 0.0
  %v39 = vld [vmem:[%s0] sm:$0xff]
  %v40 = vld [vmem:[%s0 + $0x8] sm:$0xff]
  %43 = vrot.lane.b32.xlu0 %v39, 17
  %v44 = vpop.permute.xlu0 %43
  %45 = vrot.lane.b32.xlu0 %v40, 17
  %v46 = vpop.permute.xlu0 %45
  %vm47 = vcmask 138240
  %v48 = vsel %vm47, %v44, %v46
  %vm52 = vcmask 1047688
  %53 = vst.msk [vmem:[#allocation2] sm:$0xff] %vm52, %v44
  %54 = vst [vmem:[#allocation2 + $0x8] sm:$0xff] %v48
  %55 = vst.msk [vmem:[#allocation2 + $0x10] sm:$0xff] %vm47, %v46
  %v56 = vld [vmem:[%s1] sm:$0xff]
  %58 = vset.pattern.permute.xlu0 0
  %59 = vperm.xlu0 %58, %v56
  %v60 = vpop.permute.xlu0 %59
  %62 = vst.msk [vmem:[#allocation2 + $0x18] sm:$0xff] %vm52, %v60
  %63 = vst [vmem:[#allocation2 + $0x20] sm:$0xff] %v60
  %64 = vst.msk [vmem:[#allocation2 + $0x28] sm:$0xff] %vm47, %v60
  %s65 = scalar_lea.vmem %s0, 16
  %v66 = vld [vmem:[%s65] sm:$0xff]
  %v67 = vld [vmem:[%s65 + $0x8] sm:$0xff]
  %70 = vrot.lane.b32.xlu0 %v66, 17
  %v71 = vpop.permute.xlu0 %70
  %72 = vrot.lane.b32.xlu0 %v67, 17
  %v73 = vpop.permute.xlu0 %72
  %v74 = vsel %vm47, %v71, %v73
  %s78 = scalar_lea.vmem [#allocation2], 48
  %79 = vst.msk [vmem:[%s78] sm:$0xff] %vm52, %v71
  %80 = vst [vmem:[%s78 + $0x8] sm:$0xff] %v74
  %81 = vst.msk [vmem:[%s78 + $0x10] sm:$0xff] %vm47, %v73
  %s82 = scalar_lea.vmem %s1, 8
  %v83 = vld [vmem:[%s82] sm:$0xff]
  %85 = vset.pattern.permute.xlu0 0
  %86 = vperm.xlu0 %85, %v83
  %v87 = vpop.permute.xlu0 %86
  %89 = vst.msk [vmem:[%s78 + $0x18] sm:$0xff] %vm52, %v87
  %90 = vst [vmem:[%s78 + $0x20] sm:$0xff] %v87
  %91 = vst.msk [vmem:[%s78 + $0x28] sm:$0xff] %vm47, %v87
  %v92 = vlaneseq
  %v93 = vand.u32 %v92, 127
  %v94 = vadd.s32 %v93, 128
  %v95 = vand.u32 %v93, 15
  %v96 = vand.u32 %v94, 15
  %vm97 = vcmp.gt.s32.totalorder %v95, 0
  %vm98 = vcmp.gt.s32.totalorder %v96, 0
  %vm99 = vcmp.lt.s32.totalorder %v95, 15
  %vm100 = vcmp.lt.s32.totalorder %v96, 15
  %v101 = vld [vmem:[#allocation2] sm:$0xff]
  %v102 = vld [vmem:[#allocation2 + $0x8] sm:$0xff]
  %v103 = vld [vmem:[#allocation2 + $0x18] sm:$0xff]
  %v104 = vld [vmem:[#allocation2 + $0x20] sm:$0xff]
  %v105 = vsel %vm97, 1, 0
  %v106 = vsel %vm98, 1, 0
  %vm107 = vcmp.eq.s32.totalorder %v105, 1
  %vm108 = vcmp.eq.s32.totalorder %v106, 1
  %v109 = vsel %vm107, %v101, 0.0
  %v110 = vsel %vm108, %v102, 0.0
  %v111 = vsel %vm107, %v103, 0.0
  %v112 = vsel %vm108, %v104, 0.0
  %113 = vst [vmem:[#allocation3] sm:$0xff] %v109
  %114 = vst [vmem:[#allocation3 + $0x8] sm:$0xff] %v110
  %115 = vst [vmem:[#allocation3 + $0x20] sm:$0xff] %v111
  %116 = vst [vmem:[#allocation3 + $0x28] sm:$0xff] %v112
  %v117 = vld [vmem:[#allocation2] sm:$0xff]
  %v118 = vld [vmem:[#allocation2 + $0x8] sm:$0xff]
  %v119 = vld [vmem:[#allocation2 + $0x10] sm:$0xff]
  %v120 = vld [vmem:[#allocation2 + $0x18] sm:$0xff]
  %v121 = vld [vmem:[#allocation2 + $0x20] sm:$0xff]
  %v122 = vld [vmem:[#allocation2 + $0x28] sm:$0xff]
  %129 = vrot.lane.b32.xlu0 %v117, 127
  %v130 = vpop.permute.xlu0 %129
  %131 = vrot.lane.b32.xlu0 %v118, 127
  %v132 = vpop.permute.xlu0 %131
  %133 = vrot.lane.b32.xlu0 %v119, 127
  %v134 = vpop.permute.xlu0 %133
  %135 = vrot.lane.b32.xlu0 %v120, 127
  %v136 = vpop.permute.xlu0 %135
  %137 = vrot.lane.b32.xlu0 %v121, 127
  %v138 = vpop.permute.xlu0 %137
  %139 = vrot.lane.b32.xlu0 %v122, 127
  %v140 = vpop.permute.xlu0 %139
  %vm141 = vcmask 1039360
  %v142 = vsel %vm141, %v130, %v132
  %v143 = vsel %vm141, %v132, %v134
  %v144 = vsel %vm141, %v136, %v138
  %v145 = vsel %vm141, %v138, %v140
  %150 = vst [vmem:[#allocation3 + $0x40] sm:$0xff] %v142
  %151 = vst [vmem:[#allocation3 + $0x48] sm:$0xff] %v143
  %152 = vst [vmem:[#allocation3 + $0x60] sm:$0xff] %v144
  %153 = vst [vmem:[#allocation3 + $0x68] sm:$0xff] %v145
  %v154 = vld [vmem:[#allocation2] sm:$0xff]
  %v155 = vld [vmem:[#allocation2 + $0x8] sm:$0xff]
  %v156 = vld [vmem:[#allocation2 + $0x10] sm:$0xff]
  %v157 = vld [vmem:[#allocation2 + $0x18] sm:$0xff]
  %v158 = vld [vmem:[#allocation2 + $0x20] sm:$0xff]
  %v159 = vld [vmem:[#allocation2 + $0x28] sm:$0xff]
  %v160 = vsel %vm99, 1, 0
  %v161 = vsel %vm100, 1, 0
  %vm162 = vcmp.eq.s32.totalorder %v160, 1
  %vm163 = vcmp.eq.s32.totalorder %v161, 1
  %170 = vrot.lane.b32.xlu0 %v154, 126
  %v171 = vpop.permute.xlu0 %170
  %172 = vrot.lane.b32.xlu0 %v155, 126
  %v173 = vpop.permute.xlu0 %172
  %174 = vrot.lane.b32.xlu0 %v156, 126
  %v175 = vpop.permute.xlu0 %174
  %176 = vrot.lane.b32.xlu0 %v157, 126
  %v177 = vpop.permute.xlu0 %176
  %178 = vrot.lane.b32.xlu0 %v158, 126
  %v179 = vpop.permute.xlu0 %178
  %180 = vrot.lane.b32.xlu0 %v159, 126
  %v181 = vpop.permute.xlu0 %180
  %vm182 = vcmask 1031168
  %v183 = vsel %vm182, %v171, %v173
  %v184 = vsel %vm182, %v173, %v175
  %v185 = vsel %vm182, %v177, %v179
  %v186 = vsel %vm182, %v179, %v181
  %v191 = vsel %vm162, %v183, 0.0
  %v192 = vsel %vm163, %v184, 0.0
  %v193 = vsel %vm162, %v185, 0.0
  %v194 = vsel %vm163, %v186, 0.0
  %195 = vst [vmem:[#allocation3 + $0x80] sm:$0xff] %v191
  %196 = vst [vmem:[#allocation3 + $0x88] sm:$0xff] %v192
  %197 = vst [vmem:[#allocation3 + $0xa0] sm:$0xff] %v193
  %198 = vst [vmem:[#allocation3 + $0xa8] sm:$0xff] %v194
  %v199 = vld [vmem:[#allocation2] sm:$0xff]
  %v200 = vld [vmem:[#allocation2 + $0x8] sm:$0xff]
  %v201 = vld [vmem:[#allocation2 + $0x10] sm:$0xff]
  %v202 = vld [vmem:[#allocation2 + $0x18] sm:$0xff]
  %v203 = vld [vmem:[#allocation2 + $0x20] sm:$0xff]
  %v204 = vld [vmem:[#allocation2 + $0x28] sm:$0xff]
  %211 = vrot.lane.b32.xlu0 %v199, 112
  %v212 = vpop.permute.xlu0 %211
  %213 = vrot.lane.b32.xlu0 %v200, 112
  %v214 = vpop.permute.xlu0 %213
  %215 = vrot.lane.b32.xlu0 %v201, 112
  %v216 = vpop.permute.xlu0 %215
  %217 = vrot.lane.b32.xlu0 %v202, 112
  %v218 = vpop.permute.xlu0 %217
  %219 = vrot.lane.b32.xlu0 %v203, 112
  %v220 = vpop.permute.xlu0 %219
  %221 = vrot.lane.b32.xlu0 %v204, 112
  %v222 = vpop.permute.xlu0 %221
  %vm223 = vcmask 916480
  %v224 = vsel %vm223, %v212, %v214
  %v225 = vsel %vm223, %v214, %v216
  %v226 = vsel %vm223, %v218, %v220
  %v227 = vsel %vm223, %v220, %v222
  %v232 = vsel %vm107, %v224, 0.0
  %v233 = vsel %vm108, %v225, 0.0
  %v234 = vsel %vm107, %v226, 0.0
  %v235 = vsel %vm108, %v227, 0.0
  %236 = vst [vmem:[#allocation3 + $0xc0] sm:$0xff] %v232
  %237 = vst [vmem:[#allocation3 + $0xc8] sm:$0xff] %v233
  %238 = vst [vmem:[#allocation3 + $0xe0] sm:$0xff] %v234
  %239 = vst [vmem:[#allocation3 + $0xe8] sm:$0xff] %v235
  %v240 = vld [vmem:[#allocation2] sm:$0xff]
  %v241 = vld [vmem:[#allocation2 + $0x8] sm:$0xff]
  %v242 = vld [vmem:[#allocation2 + $0x10] sm:$0xff]
  %v243 = vld [vmem:[#allocation2 + $0x18] sm:$0xff]
  %v244 = vld [vmem:[#allocation2 + $0x20] sm:$0xff]
  %v245 = vld [vmem:[#allocation2 + $0x28] sm:$0xff]
  %252 = vrot.lane.b32.xlu0 %v240, 111
  %v253 = vpop.permute.xlu0 %252
  %254 = vrot.lane.b32.xlu0 %v241, 111
  %v255 = vpop.permute.xlu0 %254
  %256 = vrot.lane.b32.xlu0 %v242, 111
  %v257 = vpop.permute.xlu0 %256
  %258 = vrot.lane.b32.xlu0 %v243, 111
  %v259 = vpop.permute.xlu0 %258
  %260 = vrot.lane.b32.xlu0 %v244, 111
  %v261 = vpop.permute.xlu0 %260
  %262 = vrot.lane.b32.xlu0 %v245, 111
  %v263 = vpop.permute.xlu0 %262
  %vm264 = vcmask 908288
  %v265 = vsel %vm264, %v253, %v255
  %v266 = vsel %vm264, %v255, %v257
  %v267 = vsel %vm264, %v259, %v261
  %v268 = vsel %vm264, %v261, %v263
  %273 = vst [vmem:[#allocation3 + $0x100] sm:$0xff] %v265
  %274 = vst [vmem:[#allocation3 + $0x108] sm:$0xff] %v266
  %275 = vst [vmem:[#allocation3 + $0x120] sm:$0xff] %v267
  %276 = vst [vmem:[#allocation3 + $0x128] sm:$0xff] %v268
  %v277 = vld [vmem:[#allocation2] sm:$0xff]
  %v278 = vld [vmem:[#allocation2 + $0x8] sm:$0xff]
  %v279 = vld [vmem:[#allocation2 + $0x10] sm:$0xff]
  %v280 = vld [vmem:[#allocation2 + $0x18] sm:$0xff]
  %v281 = vld [vmem:[#allocation2 + $0x20] sm:$0xff]
  %v282 = vld [vmem:[#allocation2 + $0x28] sm:$0xff]
  %289 = vrot.lane.b32.xlu0 %v277, 110
  %v290 = vpop.permute.xlu0 %289
  %291 = vrot.lane.b32.xlu0 %v278, 110
  %v292 = vpop.permute.xlu0 %291
  %293 = vrot.lane.b32.xlu0 %v279, 110
  %v294 = vpop.permute.xlu0 %293
  %295 = vrot.lane.b32.xlu0 %v280, 110
  %v296 = vpop.permute.xlu0 %295
  %297 = vrot.lane.b32.xlu0 %v281, 110
  %v298 = vpop.permute.xlu0 %297
  %299 = vrot.lane.b32.xlu0 %v282, 110
  %v300 = vpop.permute.xlu0 %299
  %vm301 = vcmask 900096
  %v302 = vsel %vm301, %v290, %v292
  %v303 = vsel %vm301, %v292, %v294
  %v304 = vsel %vm301, %v296, %v298
  %v305 = vsel %vm301, %v298, %v300
  %v310 = vsel %vm162, %v302, 0.0
  %v311 = vsel %vm163, %v303, 0.0
  %v312 = vsel %vm162, %v304, 0.0
  %v313 = vsel %vm163, %v305, 0.0
  %314 = vst [vmem:[#allocation3 + $0x140] sm:$0xff] %v310
  %315 = vst [vmem:[#allocation3 + $0x148] sm:$0xff] %v311
  %316 = vst [vmem:[#allocation3 + $0x160] sm:$0xff] %v312
  %317 = vst [vmem:[#allocation3 + $0x168] sm:$0xff] %v313
  %v318 = vld [vmem:[#allocation2] sm:$0xff]
  %v319 = vld [vmem:[#allocation2 + $0x8] sm:$0xff]
  %v320 = vld [vmem:[#allocation2 + $0x10] sm:$0xff]
  %v321 = vld [vmem:[#allocation2 + $0x18] sm:$0xff]
  %v322 = vld [vmem:[#allocation2 + $0x20] sm:$0xff]
  %v323 = vld [vmem:[#allocation2 + $0x28] sm:$0xff]
  %330 = vrot.lane.b32.xlu0 %v318, 96
  %v331 = vpop.permute.xlu0 %330
  %332 = vrot.lane.b32.xlu0 %v319, 96
  %v333 = vpop.permute.xlu0 %332
  %334 = vrot.lane.b32.xlu0 %v320, 96
  %v335 = vpop.permute.xlu0 %334
  %336 = vrot.lane.b32.xlu0 %v321, 96
  %v337 = vpop.permute.xlu0 %336
  %338 = vrot.lane.b32.xlu0 %v322, 96
  %v339 = vpop.permute.xlu0 %338
  %340 = vrot.lane.b32.xlu0 %v323, 96
  %v341 = vpop.permute.xlu0 %340
  %vm342 = vcmask 785408
  %v343 = vsel %vm342, %v331, %v333
  %v344 = vsel %vm342, %v333, %v335
  %v345 = vsel %vm342, %v337, %v339
  %v346 = vsel %vm342, %v339, %v341
  %v351 = vsel %vm107, %v343, 0.0
  %v352 = vsel %vm108, %v344, 0.0
  %v353 = vsel %vm107, %v345, 0.0
  %v354 = vsel %vm108, %v346, 0.0
  %355 = vst [vmem:[#allocation3 + $0x180] sm:$0xff] %v351
  %356 = vst [vmem:[#allocation3 + $0x188] sm:$0xff] %v352
  %357 = vst [vmem:[#allocation3 + $0x1a0] sm:$0xff] %v353
  %358 = vst [vmem:[#allocation3 + $0x1a8] sm:$0xff] %v354
  %v359 = vld [vmem:[#allocation2] sm:$0xff]
  %v360 = vld [vmem:[#allocation2 + $0x8] sm:$0xff]
  %v361 = vld [vmem:[#allocation2 + $0x10] sm:$0xff]
  %v362 = vld [vmem:[#allocation2 + $0x18] sm:$0xff]
  %v363 = vld [vmem:[#allocation2 + $0x20] sm:$0xff]
  %v364 = vld [vmem:[#allocation2 + $0x28] sm:$0xff]
  %371 = vrot.lane.b32.xlu0 %v359, 95
  %v372 = vpop.permute.xlu0 %371
  %373 = vrot.lane.b32.xlu0 %v360, 95
  %v374 = vpop.permute.xlu0 %373
  %375 = vrot.lane.b32.xlu0 %v361, 95
  %v376 = vpop.permute.xlu0 %375
  %377 = vrot.lane.b32.xlu0 %v362, 95
  %v378 = vpop.permute.xlu0 %377
  %379 = vrot.lane.b32.xlu0 %v363, 95
  %v380 = vpop.permute.xlu0 %379
  %381 = vrot.lane.b32.xlu0 %v364, 95
  %v382 = vpop.permute.xlu0 %381
  %vm383 = vcmask 777216
  %v384 = vsel %vm383, %v372, %v374
  %v385 = vsel %vm383, %v374, %v376
  %v386 = vsel %vm383, %v378, %v380
  %v387 = vsel %vm383, %v380, %v382
  %392 = vst [vmem:[#allocation3 + $0x1c0] sm:$0xff] %v384
  %393 = vst [vmem:[#allocation3 + $0x1c8] sm:$0xff] %v385
  %394 = vst [vmem:[#allocation3 + $0x1e0] sm:$0xff] %v386
  %395 = vst [vmem:[#allocation3 + $0x1e8] sm:$0xff] %v387
  %v396 = vld [vmem:[#allocation2] sm:$0xff]
  %v397 = vld [vmem:[#allocation2 + $0x8] sm:$0xff]
  %v398 = vld [vmem:[#allocation2 + $0x10] sm:$0xff]
  %v399 = vld [vmem:[#allocation2 + $0x18] sm:$0xff]
  %v400 = vld [vmem:[#allocation2 + $0x20] sm:$0xff]
  %v401 = vld [vmem:[#allocation2 + $0x28] sm:$0xff]
  %408 = vrot.lane.b32.xlu0 %v396, 94
  %v409 = vpop.permute.xlu0 %408
  %410 = vrot.lane.b32.xlu0 %v397, 94
  %v411 = vpop.permute.xlu0 %410
  %412 = vrot.lane.b32.xlu0 %v398, 94
  %v413 = vpop.permute.xlu0 %412
  %414 = vrot.lane.b32.xlu0 %v399, 94
  %v415 = vpop.permute.xlu0 %414
  %416 = vrot.lane.b32.xlu0 %v400, 94
  %v417 = vpop.permute.xlu0 %416
  %418 = vrot.lane.b32.xlu0 %v401, 94
  %v419 = vpop.permute.xlu0 %418
  %vm420 = vcmask 769024
  %v421 = vsel %vm420, %v409, %v411
  %v422 = vsel %vm420, %v411, %v413
  %v423 = vsel %vm420, %v415, %v417
  %v424 = vsel %vm420, %v417, %v419
  %v429 = vsel %vm162, %v421, 0.0
  %v430 = vsel %vm163, %v422, 0.0
  %v431 = vsel %vm162, %v423, 0.0
  %v432 = vsel %vm163, %v424, 0.0
  %433 = vst [vmem:[#allocation3 + $0x200] sm:$0xff] %v429
  %434 = vst [vmem:[#allocation3 + $0x208] sm:$0xff] %v430
  %435 = vst [vmem:[#allocation3 + $0x220] sm:$0xff] %v431
  %436 = vst [vmem:[#allocation3 + $0x228] sm:$0xff] %v432
  %v437 = vld [vmem:[%s78] sm:$0xff]
  %v438 = vld [vmem:[%s78 + $0x8] sm:$0xff]
  %v439 = vld [vmem:[%s78 + $0x18] sm:$0xff]
  %v440 = vld [vmem:[%s78 + $0x20] sm:$0xff]
  %v441 = vsel %vm107, %v437, 0.0
  %v442 = vsel %vm108, %v438, 0.0
  %v443 = vsel %vm107, %v439, 0.0
  %v444 = vsel %vm108, %v440, 0.0
  %445 = vst [vmem:[#allocation3 + $0x10] sm:$0xff] %v441
  %446 = vst [vmem:[#allocation3 + $0x18] sm:$0xff] %v442
  %447 = vst [vmem:[#allocation3 + $0x30] sm:$0xff] %v443
  %448 = vst [vmem:[#allocation3 + $0x38] sm:$0xff] %v444
  %v449 = vld [vmem:[%s78] sm:$0xff]
  %v450 = vld [vmem:[%s78 + $0x8] sm:$0xff]
  %v451 = vld [vmem:[%s78 + $0x10] sm:$0xff]
  %v452 = vld [vmem:[%s78 + $0x18] sm:$0xff]
  %v453 = vld [vmem:[%s78 + $0x20] sm:$0xff]
  %v454 = vld [vmem:[%s78 + $0x28] sm:$0xff]
  %461 = vrot.lane.b32.xlu0 %v449, 127
  %v462 = vpop.permute.xlu0 %461
  %463 = vrot.lane.b32.xlu0 %v450, 127
  %v464 = vpop.permute.xlu0 %463
  %465 = vrot.lane.b32.xlu0 %v451, 127
  %v466 = vpop.permute.xlu0 %465
  %467 = vrot.lane.b32.xlu0 %v452, 127
  %v468 = vpop.permute.xlu0 %467
  %469 = vrot.lane.b32.xlu0 %v453, 127
  %v470 = vpop.permute.xlu0 %469
  %471 = vrot.lane.b32.xlu0 %v454, 127
  %v472 = vpop.permute.xlu0 %471
  %v473 = vsel %vm141, %v462, %v464
  %v474 = vsel %vm141, %v464, %v466
  %v475 = vsel %vm141, %v468, %v470
  %v476 = vsel %vm141, %v470, %v472
  %481 = vst [vmem:[#allocation3 + $0x50] sm:$0xff] %v473
  %482 = vst [vmem:[#allocation3 + $0x58] sm:$0xff] %v474
  %483 = vst [vmem:[#allocation3 + $0x70] sm:$0xff] %v475
  %484 = vst [vmem:[#allocation3 + $0x78] sm:$0xff] %v476
  %v485 = vld [vmem:[%s78] sm:$0xff]
  %v486 = vld [vmem:[%s78 + $0x8] sm:$0xff]
  %v487 = vld [vmem:[%s78 + $0x10] sm:$0xff]
  %v488 = vld [vmem:[%s78 + $0x18] sm:$0xff]
  %v489 = vld [vmem:[%s78 + $0x20] sm:$0xff]
  %v490 = vld [vmem:[%s78 + $0x28] sm:$0xff]
  %497 = vrot.lane.b32.xlu0 %v485, 126
  %v498 = vpop.permute.xlu0 %497
  %499 = vrot.lane.b32.xlu0 %v486, 126
  %v500 = vpop.permute.xlu0 %499
  %501 = vrot.lane.b32.xlu0 %v487, 126
  %v502 = vpop.permute.xlu0 %501
  %503 = vrot.lane.b32.xlu0 %v488, 126
  %v504 = vpop.permute.xlu0 %503
  %505 = vrot.lane.b32.xlu0 %v489, 126
  %v506 = vpop.permute.xlu0 %505
  %507 = vrot.lane.b32.xlu0 %v490, 126
  %v508 = vpop.permute.xlu0 %507
  %v509 = vsel %vm182, %v498, %v500
  %v510 = vsel %vm182, %v500, %v502
  %v511 = vsel %vm182, %v504, %v506
  %v512 = vsel %vm182, %v506, %v508
  %v517 = vsel %vm162, %v509, 0.0
  %v518 = vsel %vm163, %v510, 0.0
  %v519 = vsel %vm162, %v511, 0.0
  %v520 = vsel %vm163, %v512, 0.0
  %521 = vst [vmem:[#allocation3 + $0x90] sm:$0xff] %v517
  %522 = vst [vmem:[#allocation3 + $0x98] sm:$0xff] %v518
  %523 = vst [vmem:[#allocation3 + $0xb0] sm:$0xff] %v519
  %524 = vst [vmem:[#allocation3 + $0xb8] sm:$0xff] %v520
  %v525 = vld [vmem:[%s78] sm:$0xff]
  %v526 = vld [vmem:[%s78 + $0x8] sm:$0xff]
  %v527 = vld [vmem:[%s78 + $0x10] sm:$0xff]
  %v528 = vld [vmem:[%s78 + $0x18] sm:$0xff]
  %v529 = vld [vmem:[%s78 + $0x20] sm:$0xff]
  %v530 = vld [vmem:[%s78 + $0x28] sm:$0xff]
  %537 = vrot.lane.b32.xlu0 %v525, 112
  %v538 = vpop.permute.xlu0 %537
  %539 = vrot.lane.b32.xlu0 %v526, 112
  %v540 = vpop.permute.xlu0 %539
  %541 = vrot.lane.b32.xlu0 %v527, 112
  %v542 = vpop.permute.xlu0 %541
  %543 = vrot.lane.b32.xlu0 %v528, 112
  %v544 = vpop.permute.xlu0 %543
  %545 = vrot.lane.b32.xlu0 %v529, 112
  %v546 = vpop.permute.xlu0 %545
  %547 = vrot.lane.b32.xlu0 %v530, 112
  %v548 = vpop.permute.xlu0 %547
  %v549 = vsel %vm223, %v538, %v540
  %v550 = vsel %vm223, %v540, %v542
  %v551 = vsel %vm223, %v544, %v546
  %v552 = vsel %vm223, %v546, %v548
  %v557 = vsel %vm107, %v549, 0.0
  %v558 = vsel %vm108, %v550, 0.0
  %v559 = vsel %vm107, %v551, 0.0
  %v560 = vsel %vm108, %v552, 0.0
  %561 = vst [vmem:[#allocation3 + $0xd0] sm:$0xff] %v557
  %562 = vst [vmem:[#allocation3 + $0xd8] sm:$0xff] %v558
  %563 = vst [vmem:[#allocation3 + $0xf0] sm:$0xff] %v559
  %564 = vst [vmem:[#allocation3 + $0xf8] sm:$0xff] %v560
  %v565 = vld [vmem:[%s78] sm:$0xff]
  %v566 = vld [vmem:[%s78 + $0x8] sm:$0xff]
  %v567 = vld [vmem:[%s78 + $0x10] sm:$0xff]
  %v568 = vld [vmem:[%s78 + $0x18] sm:$0xff]
  %v569 = vld [vmem:[%s78 + $0x20] sm:$0xff]
  %v570 = vld [vmem:[%s78 + $0x28] sm:$0xff]
  %577 = vrot.lane.b32.xlu0 %v565, 111
  %v578 = vpop.permute.xlu0 %577
  %579 = vrot.lane.b32.xlu0 %v566, 111
  %v580 = vpop.permute.xlu0 %579
  %581 = vrot.lane.b32.xlu0 %v567, 111
  %v582 = vpop.permute.xlu0 %581
  %583 = vrot.lane.b32.xlu0 %v568, 111
  %v584 = vpop.permute.xlu0 %583
  %585 = vrot.lane.b32.xlu0 %v569, 111
  %v586 = vpop.permute.xlu0 %585
  %587 = vrot.lane.b32.xlu0 %v570, 111
  %v588 = vpop.permute.xlu0 %587
  %v589 = vsel %vm264, %v578, %v580
  %v590 = vsel %vm264, %v580, %v582
  %v591 = vsel %vm264, %v584, %v586
  %v592 = vsel %vm264, %v586, %v588
  %597 = vst [vmem:[#allocation3 + $0x110] sm:$0xff] %v589
  %598 = vst [vmem:[#allocation3 + $0x118] sm:$0xff] %v590
  %599 = vst [vmem:[#allocation3 + $0x130] sm:$0xff] %v591
  %600 = vst [vmem:[#allocation3 + $0x138] sm:$0xff] %v592
  %v601 = vld [vmem:[%s78] sm:$0xff]
  %v602 = vld [vmem:[%s78 + $0x8] sm:$0xff]
  %v603 = vld [vmem:[%s78 + $0x10] sm:$0xff]
  %v604 = vld [vmem:[%s78 + $0x18] sm:$0xff]
  %v605 = vld [vmem:[%s78 + $0x20] sm:$0xff]
  %v606 = vld [vmem:[%s78 + $0x28] sm:$0xff]
  %613 = vrot.lane.b32.xlu0 %v601, 110
  %v614 = vpop.permute.xlu0 %613
  %615 = vrot.lane.b32.xlu0 %v602, 110
  %v616 = vpop.permute.xlu0 %615
  %617 = vrot.lane.b32.xlu0 %v603, 110
  %v618 = vpop.permute.xlu0 %617
  %619 = vrot.lane.b32.xlu0 %v604, 110
  %v620 = vpop.permute.xlu0 %619
  %621 = vrot.lane.b32.xlu0 %v605, 110
  %v622 = vpop.permute.xlu0 %621
  %623 = vrot.lane.b32.xlu0 %v606, 110
  %v624 = vpop.permute.xlu0 %623
  %v625 = vsel %vm301, %v614, %v616
  %v626 = vsel %vm301, %v616, %v618
  %v627 = vsel %vm301, %v620, %v622
  %v628 = vsel %vm301, %v622, %v624
  %v633 = vsel %vm162, %v625, 0.0
  %v634 = vsel %vm163, %v626, 0.0
  %v635 = vsel %vm162, %v627, 0.0
  %v636 = vsel %vm163, %v628, 0.0
  %637 = vst [vmem:[#allocation3 + $0x150] sm:$0xff] %v633
  %638 = vst [vmem:[#allocation3 + $0x158] sm:$0xff] %v634
  %639 = vst [vmem:[#allocation3 + $0x170] sm:$0xff] %v635
  %640 = vst [vmem:[#allocation3 + $0x178] sm:$0xff] %v636
  %v641 = vld [vmem:[%s78] sm:$0xff]
  %v642 = vld [vmem:[%s78 + $0x8] sm:$0xff]
  %v643 = vld [vmem:[%s78 + $0x10] sm:$0xff]
  %v644 = vld [vmem:[%s78 + $0x18] sm:$0xff]
  %v645 = vld [vmem:[%s78 + $0x20] sm:$0xff]
  %v646 = vld [vmem:[%s78 + $0x28] sm:$0xff]
  %653 = vrot.lane.b32.xlu0 %v641, 96
  %v654 = vpop.permute.xlu0 %653
  %655 = vrot.lane.b32.xlu0 %v642, 96
  %v656 = vpop.permute.xlu0 %655
  %657 = vrot.lane.b32.xlu0 %v643, 96
  %v658 = vpop.permute.xlu0 %657
  %659 = vrot.lane.b32.xlu0 %v644, 96
  %v660 = vpop.permute.xlu0 %659
  %661 = vrot.lane.b32.xlu0 %v645, 96
  %v662 = vpop.permute.xlu0 %661
  %663 = vrot.lane.b32.xlu0 %v646, 96
  %v664 = vpop.permute.xlu0 %663
  %v665 = vsel %vm342, %v654, %v656
  %v666 = vsel %vm342, %v656, %v658
  %v667 = vsel %vm342, %v660, %v662
  %v668 = vsel %vm342, %v662, %v664
  %v673 = vsel %vm107, %v665, 0.0
  %v674 = vsel %vm108, %v666, 0.0
  %v675 = vsel %vm107, %v667, 0.0
  %v676 = vsel %vm108, %v668, 0.0
  %677 = vst [vmem:[#allocation3 + $0x190] sm:$0xff] %v673
  %678 = vst [vmem:[#allocation3 + $0x198] sm:$0xff] %v674
  %679 = vst [vmem:[#allocation3 + $0x1b0] sm:$0xff] %v675
  %680 = vst [vmem:[#allocation3 + $0x1b8] sm:$0xff] %v676
  %v681 = vld [vmem:[%s78] sm:$0xff]
  %v682 = vld [vmem:[%s78 + $0x8] sm:$0xff]
  %v683 = vld [vmem:[%s78 + $0x10] sm:$0xff]
  %v684 = vld [vmem:[%s78 + $0x18] sm:$0xff]
  %v685 = vld [vmem:[%s78 + $0x20] sm:$0xff]
  %v686 = vld [vmem:[%s78 + $0x28] sm:$0xff]
  %693 = vrot.lane.b32.xlu0 %v681, 95
  %v694 = vpop.permute.xlu0 %693
  %695 = vrot.lane.b32.xlu0 %v682, 95
  %v696 = vpop.permute.xlu0 %695
  %697 = vrot.lane.b32.xlu0 %v683, 95
  %v698 = vpop.permute.xlu0 %697
  %699 = vrot.lane.b32.xlu0 %v684, 95
  %v700 = vpop.permute.xlu0 %699
  %701 = vrot.lane.b32.xlu0 %v685, 95
  %v702 = vpop.permute.xlu0 %701
  %703 = vrot.lane.b32.xlu0 %v686, 95
  %v704 = vpop.permute.xlu0 %703
  %v705 = vsel %vm383, %v694, %v696
  %v706 = vsel %vm383, %v696, %v698
  %v707 = vsel %vm383, %v700, %v702
  %v708 = vsel %vm383, %v702, %v704
  %713 = vst [vmem:[#allocation3 + $0x1d0] sm:$0xff] %v705
  %714 = vst [vmem:[#allocation3 + $0x1d8] sm:$0xff] %v706
  %715 = vst [vmem:[#allocation3 + $0x1f0] sm:$0xff] %v707
  %716 = vst [vmem:[#allocation3 + $0x1f8] sm:$0xff] %v708
  %v717 = vld [vmem:[%s78] sm:$0xff]
  %v718 = vld [vmem:[%s78 + $0x8] sm:$0xff]
  %v719 = vld [vmem:[%s78 + $0x10] sm:$0xff]
  %v720 = vld [vmem:[%s78 + $0x18] sm:$0xff]
  %v721 = vld [vmem:[%s78 + $0x20] sm:$0xff]
  %v722 = vld [vmem:[%s78 + $0x28] sm:$0xff]
  %729 = vrot.lane.b32.xlu0 %v717, 94
  %v730 = vpop.permute.xlu0 %729
  %731 = vrot.lane.b32.xlu0 %v718, 94
  %v732 = vpop.permute.xlu0 %731
  %733 = vrot.lane.b32.xlu0 %v719, 94
  %v734 = vpop.permute.xlu0 %733
  %735 = vrot.lane.b32.xlu0 %v720, 94
  %v736 = vpop.permute.xlu0 %735
  %737 = vrot.lane.b32.xlu0 %v721, 94
  %v738 = vpop.permute.xlu0 %737
  %739 = vrot.lane.b32.xlu0 %v722, 94
  %v740 = vpop.permute.xlu0 %739
  %v741 = vsel %vm420, %v730, %v732
  %v742 = vsel %vm420, %v732, %v734
  %v743 = vsel %vm420, %v736, %v738
  %v744 = vsel %vm420, %v738, %v740
  %v749 = vsel %vm162, %v741, 0.0
  %v750 = vsel %vm163, %v742, 0.0
  %v751 = vsel %vm162, %v743, 0.0
  %v752 = vsel %vm163, %v744, 0.0
  %753 = vst [vmem:[#allocation3 + $0x210] sm:$0xff] %v749
  %754 = vst [vmem:[#allocation3 + $0x218] sm:$0xff] %v750
  %755 = vst [vmem:[#allocation3 + $0x230] sm:$0xff] %v751
  %756 = vst [vmem:[#allocation3 + $0x238] sm:$0xff] %v752
  %v757 = vld [vmem:[%s3] sm:$0xff]
  %v758 = vld [vmem:[%s3 + $0x8] sm:$0xff]
  %v759 = vld [vmem:[#allocation3] sm:$0xff]
  %v760 = vld [vmem:[#allocation3 + $0x8] sm:$0xff]
  %v761 = vld [vmem:[#allocation3 + $0x10] sm:$0xff]
  %v762 = vld [vmem:[#allocation3 + $0x18] sm:$0xff]
  %v763 = vld [vmem:[#allocation3 + $0x20] sm:$0xff]
  %v764 = vld [vmem:[#allocation3 + $0x28] sm:$0xff]
  %v765 = vld [vmem:[#allocation3 + $0x30] sm:$0xff]
  %v766 = vld [vmem:[#allocation3 + $0x38] sm:$0xff]
  %v767 = vld [vmem:[#allocation3 + $0x40] sm:$0xff]
  %v768 = vld [vmem:[#allocation3 + $0x48] sm:$0xff]
  %v769 = vld [vmem:[#allocation3 + $0x50] sm:$0xff]
  %v770 = vld [vmem:[#allocation3 + $0x58] sm:$0xff]
  %v771 = vld [vmem:[#allocation3 + $0x60] sm:$0xff]
  %v772 = vld [vmem:[#allocation3 + $0x68] sm:$0xff]
  %v773 = vld [vmem:[#allocation3 + $0x70] sm:$0xff]
  %v774 = vld [vmem:[#allocation3 + $0x78] sm:$0xff]
  %v775 = vld [vmem:[#allocation3 + $0x80] sm:$0xff]
  %v776 = vld [vmem:[#allocation3 + $0x88] sm:$0xff]
  %v777 = vld [vmem:[#allocation3 + $0x90] sm:$0xff]
  %v778 = vld [vmem:[#allocation3 + $0x98] sm:$0xff]
  %v779 = vld [vmem:[#allocation3 + $0xa0] sm:$0xff]
  %v780 = vld [vmem:[#allocation3 + $0xa8] sm:$0xff]
  %v781 = vld [vmem:[#allocation3 + $0xb0] sm:$0xff]
  %v782 = vld [vmem:[#allocation3 + $0xb8] sm:$0xff]
  %v783 = vld [vmem:[#allocation3 + $0xc0] sm:$0xff]
  %v784 = vld [vmem:[#allocation3 + $0xc8] sm:$0xff]
  %v785 = vld [vmem:[#allocation3 + $0xd0] sm:$0xff]
  %v786 = vld [vmem:[#allocation3 + $0xd8] sm:$0xff]
  %v787 = vld [vmem:[#allocation3 + $0xe0] sm:$0xff]
  %v788 = vld [vmem:[#allocation3 + $0xe8] sm:$0xff]
  %v789 = vld [vmem:[#allocation3 + $0xf0] sm:$0xff]
  %v790 = vld [vmem:[#allocation3 + $0xf8] sm:$0xff]
  %v791 = vld [vmem:[#allocation3 + $0x100] sm:$0xff]
  %v792 = vld [vmem:[#allocation3 + $0x108] sm:$0xff]
  %v793 = vld [vmem:[#allocation3 + $0x110] sm:$0xff]
  %v794 = vld [vmem:[#allocation3 + $0x118] sm:$0xff]
  %v795 = vld [vmem:[#allocation3 + $0x120] sm:$0xff]
  %v796 = vld [vmem:[#allocation3 + $0x128] sm:$0xff]
  %v797 = vld [vmem:[#allocation3 + $0x130] sm:$0xff]
  %v798 = vld [vmem:[#allocation3 + $0x138] sm:$0xff]
  %v799 = vld [vmem:[#allocation3 + $0x140] sm:$0xff]
  %v800 = vld [vmem:[#allocation3 + $0x148] sm:$0xff]
  %v801 = vld [vmem:[#allocation3 + $0x150] sm:$0xff]
  %v802 = vld [vmem:[#allocation3 + $0x158] sm:$0xff]
  %v803 = vld [vmem:[#allocation3 + $0x160] sm:$0xff]
  %v804 = vld [vmem:[#allocation3 + $0x168] sm:$0xff]
  %v805 = vld [vmem:[#allocation3 + $0x170] sm:$0xff]
  %v806 = vld [vmem:[#allocation3 + $0x178] sm:$0xff]
  %v807 = vld [vmem:[#allocation3 + $0x180] sm:$0xff]
  %v808 = vld [vmem:[#allocation3 + $0x188] sm:$0xff]
  %v809 = vld [vmem:[#allocation3 + $0x190] sm:$0xff]
  %v810 = vld [vmem:[#allocation3 + $0x198] sm:$0xff]
  %v811 = vld [vmem:[#allocation3 + $0x1a0] sm:$0xff]
  %v812 = vld [vmem:[#allocation3 + $0x1a8] sm:$0xff]
  %v813 = vld [vmem:[#allocation3 + $0x1b0] sm:$0xff]
  %v814 = vld [vmem:[#allocation3 + $0x1b8] sm:$0xff]
  %v815 = vld [vmem:[#allocation3 + $0x1c0] sm:$0xff]
  %v816 = vld [vmem:[#allocation3 + $0x1c8] sm:$0xff]
  %v817 = vld [vmem:[#allocation3 + $0x1d0] sm:$0xff]
  %v818 = vld [vmem:[#allocation3 + $0x1d8] sm:$0xff]
  %v819 = vld [vmem:[#allocation3 + $0x1e0] sm:$0xff]
  %v820 = vld [vmem:[#allocation3 + $0x1e8] sm:$0xff]
  %v821 = vld [vmem:[#allocation3 + $0x1f0] sm:$0xff]
  %v822 = vld [vmem:[#allocation3 + $0x1f8] sm:$0xff]
  %v823 = vld [vmem:[#allocation3 + $0x200] sm:$0xff]
  %v824 = vld [vmem:[#allocation3 + $0x208] sm:$0xff]
  %v825 = vld [vmem:[#allocation3 + $0x210] sm:$0xff]
  %v826 = vld [vmem:[#allocation3 + $0x218] sm:$0xff]
  %v827 = vld [vmem:[#allocation3 + $0x220] sm:$0xff]
  %v828 = vld [vmem:[#allocation3 + $0x228] sm:$0xff]
  %v829 = vld [vmem:[#allocation3 + $0x230] sm:$0xff]
  %v830 = vld [vmem:[#allocation3 + $0x238] sm:$0xff]
  %v831 = vld [vmem:[%s4] sm:$0xff]
  %833 = vset.pattern.permute.xlu0 0
  %834 = vperm.xlu0 %833, %v831
  %v835 = vpop.permute.xlu0 %834
  %vm837 = vcmask 130048
  %v839 = vsel %vm837, %v758, 0
  %841 = vmatprep.subr.mxu0 %v760
  %842 = vmatpush1.msra.mxu0 %v759
  %843 = vmatprep.subr.mxu0 %v764
  %844 = vmatpush1.msra.mxu0 %v763
  %845 = vmatprep.subr.mxu0 %v768
  %846 = vmatpush1.msra.mxu0 %v767
  %847 = vmatprep.subr.mxu0 %v772
  %848 = vmatpush1.msra.mxu0 %v771
  %849 = vmatprep.subr.mxu0 %v776
  %850 = vmatpush1.msra.mxu0 %v775
  %851 = vmatprep.subr.mxu0 %v780
  %852 = vmatpush1.msra.mxu0 %v779
  %853 = vmatprep.subr.mxu0 %v784
  %854 = vmatpush1.msra.mxu0 %v783
  %855 = vmatprep.subr.mxu0 %v788
  %856 = vmatpush1.msra.mxu0 %v787
  %857 = vmatprep.subr.mxu0 %v792
  %858 = vmatpush1.msra.mxu0 %v791
  %859 = vmatprep.subr.mxu0 %v796
  %860 = vmatpush1.msra.mxu0 %v795
  %861 = vmatprep.subr.mxu0 %v800
  %862 = vmatpush1.msra.mxu0 %v799
  %863 = vmatprep.subr.mxu0 %v804
  %864 = vmatpush1.msra.mxu0 %v803
  %865 = vmatprep.subr.mxu0 %v808
  %866 = vmatpush1.msra.mxu0 %v807
  %867 = vmatprep.subr.mxu0 %v812
  %868 = vmatpush1.msra.mxu0 %v811
  %869 = vmatprep.subr.mxu0 %v816
  %870 = vmatpush1.msra.mxu0 %v815
  %871 = vmatprep.subr.mxu0 %v820
  %872 = vmatpush1.msra.mxu0 %v819
  %873 = vmatprep.subr.mxu0 %v824
  %874 = vmatpush1.msra.mxu0 %v823
  %875 = vmatprep.subr.mxu0 %v828
  %876 = vmatpush1.msra.mxu0 %v827
  %877 = vmatprep.subr.mxu0 0.0
  %878 = vmatpush1.msra.mxu0 0.0
  %879 = vmatprep.subr.mxu0 0.0
  %880 = vmatpush1.msra.mxu0 0.0
  %881 = vmatprep.subr.mxu0 0.0
  %882 = vmatpush1.msra.mxu0 0.0
  %883 = vmatprep.subr.mxu0 0.0
  %884 = vmatpush1.msra.mxu0 0.0
  %885 = vmatprep.subr.mxu0 0.0
  %886 = vmatpush1.msra.mxu0 0.0
  %887 = vmatprep.subr.mxu0 0.0
  %888 = vmatpush1.msra.mxu0 0.0
  %889 = vmatprep.subr.mxu0 0.0
  %890 = vmatpush1.msra.mxu0 0.0
  %891 = vmatprep.subr.mxu0 0.0
  %892 = vmatpush1.msra.mxu0 0.0
  %893 = vmatprep.subr.mxu0 0.0
  %894 = vmatpush1.msra.mxu0 0.0
  %895 = vmatprep.subr.mxu0 0.0
  %896 = vmatpush1.msra.mxu0 0.0
  %897 = vmatprep.subr.mxu0 0.0
  %898 = vmatpush1.msra.mxu0 0.0
  %899 = vmatprep.subr.mxu0 0.0
  %900 = vmatpush1.msra.mxu0 0.0
  %901 = vmatprep.subr.mxu0 0.0
  %902 = vmatpush1.msra.mxu0 0.0
  %903 = vmatprep.subr.mxu0 0.0
  %904 = vmatpush1.msra.mxu0 0.0
  %905 = vmatprep.mubr.f32.mxu0 %v839
  %906 = vmatmul.mubr.f32.gmra.mrb[0].mxu0 %v757
  %v907 = vpop.f32.mrb[0].mxu0
  %v908 = vadd.f32 %v835, %v907
  %v909 = vpop.f32.mrb[0].mxu0
  %v910 = vadd.f32 %v835, %v909
  %911 = vdwg.mxu0
  %912 = vmatprep.subr.mxu0 %v762
  %913 = vmatpush1.msra.mxu0 %v761
  %914 = vmatprep.subr.mxu0 %v766
  %915 = vmatpush1.msra.mxu0 %v765
  %916 = vmatprep.subr.mxu0 %v770
  %917 = vmatpush1.msra.mxu0 %v769
  %918 = vmatprep.subr.mxu0 %v774
  %919 = vmatpush1.msra.mxu0 %v773
  %920 = vmatprep.subr.mxu0 %v778
  %921 = vmatpush1.msra.mxu0 %v777
  %922 = vmatprep.subr.mxu0 %v782
  %923 = vmatpush1.msra.mxu0 %v781
  %924 = vmatprep.subr.mxu0 %v786
  %925 = vmatpush1.msra.mxu0 %v785
  %926 = vmatprep.subr.mxu0 %v790
  %927 = vmatpush1.msra.mxu0 %v789
  %928 = vmatprep.subr.mxu0 %v794
  %929 = vmatpush1.msra.mxu0 %v793
  %930 = vmatprep.subr.mxu0 %v798
  %931 = vmatpush1.msra.mxu0 %v797
  %932 = vmatprep.subr.mxu0 %v802
  %933 = vmatpush1.msra.mxu0 %v801
  %934 = vmatprep.subr.mxu0 %v806
  %935 = vmatpush1.msra.mxu0 %v805
  %936 = vmatprep.subr.mxu0 %v810
  %937 = vmatpush1.msra.mxu0 %v809
  %938 = vmatprep.subr.mxu0 %v814
  %939 = vmatpush1.msra.mxu0 %v813
  %940 = vmatprep.subr.mxu0 %v818
  %941 = vmatpush1.msra.mxu0 %v817
  %942 = vmatprep.subr.mxu0 %v822
  %943 = vmatpush1.msra.mxu0 %v821
  %944 = vmatprep.subr.mxu0 %v826
  %945 = vmatpush1.msra.mxu0 %v825
  %946 = vmatprep.subr.mxu0 %v830
  %947 = vmatpush1.msra.mxu0 %v829
  %948 = vmatprep.subr.mxu0 0.0
  %949 = vmatpush1.msra.mxu0 0.0
  %950 = vmatprep.subr.mxu0 0.0
  %951 = vmatpush1.msra.mxu0 0.0
  %952 = vmatprep.subr.mxu0 0.0
  %953 = vmatpush1.msra.mxu0 0.0
  %954 = vmatprep.subr.mxu0 0.0
  %955 = vmatpush1.msra.mxu0 0.0
  %956 = vmatprep.subr.mxu0 0.0
  %957 = vmatpush1.msra.mxu0 0.0
  %958 = vmatprep.subr.mxu0 0.0
  %959 = vmatpush1.msra.mxu0 0.0
  %960 = vmatprep.subr.mxu0 0.0
  %961 = vmatpush1.msra.mxu0 0.0
  %962 = vmatprep.subr.mxu0 0.0
  %963 = vmatpush1.msra.mxu0 0.0
  %964 = vmatprep.subr.mxu0 0.0
  %965 = vmatpush1.msra.mxu0 0.0
  %966 = vmatprep.subr.mxu0 0.0
  %967 = vmatpush1.msra.mxu0 0.0
  %968 = vmatprep.subr.mxu0 0.0
  %969 = vmatpush1.msra.mxu0 0.0
  %970 = vmatprep.subr.mxu0 0.0
  %971 = vmatpush1.msra.mxu0 0.0
  %972 = vmatprep.subr.mxu0 0.0
  %973 = vmatpush1.msra.mxu0 0.0
  %974 = vmatprep.subr.mxu0 0.0
  %975 = vmatpush1.msra.mxu0 0.0
  %976 = vmatprep.mubr.f32.mxu0 %v839
  %977 = vmatmul.mubr.f32.gmra.mrb[0].mxu0 %v757
  %v978 = vpop.f32.mrb[0].mxu0
  %v979 = vadd.f32 %v835, %v978
  %v980 = vpop.f32.mrb[0].mxu0
  %v981 = vadd.f32 %v835, %v980
  %982 = vdwg.mxu0
  %v983 = vadd.f32 %v908, %v910
  %v984 = vadd.f32 %v983, %v979
  %v985 = vadd.f32 %v984, %v981
  %986 = vadd.xlane.f32.xlu0 %v985
  %v987 = vpop.xlane.xlu0 %986
  %v988 = vmul.f32 %v987, 0.001953125
  %v989 = vmul.f32 %v908, %v908
  %v990 = vmul.f32 %v910, %v910
  %v991 = vmul.f32 %v979, %v979
  %v992 = vmul.f32 %v981, %v981
  %v993 = vadd.f32 %v989, %v990
  %v994 = vadd.f32 %v993, %v991
  %v995 = vadd.f32 %v994, %v992
  %996 = vadd.xlane.f32.xlu0 %v995
  %v997 = vpop.xlane.xlu0 %996
  %v998 = vmul.f32 %v997, 0.001953125
  %v999 = vmul.f32 %v988, %v988
  %v1000 = vsub.f32 %v998, %v999
  %v1001 = vld [vmem:[%s5] sm:$0xff]
  %v1002 = vadd.f32 %v1000, 1e-05
  %v1003 = vrsqrt.pop %v1002
  %v1004 = vmul.f32 %v1001, %v1003
  %v1005 = vld [vmem:[%s6] sm:$0xff]
  %v1006 = vmul.f32 %v988, %v1004
  %v1007 = vsub.f32 %v1005, %v1006
  %1009 = vset.pattern.permute.xlu0 0
  %1010 = vperm.xlu0 %1009, %v1004
  %v1011 = vpop.permute.xlu0 %1010
  %v1013 = vmul.f32 %v908, %v1011
  %v1014 = vmul.f32 %v910, %v1011
  %v1015 = vmul.f32 %v979, %v1011
  %v1016 = vmul.f32 %v981, %v1011
  %1018 = vset.pattern.permute.xlu0 0
  %1019 = vperm.xlu0 %1018, %v1007
  %v1020 = vpop.permute.xlu0 %1019
  %v1022 = vadd.f32 %v1013, %v1020
  %v1023 = vadd.f32 %v1014, %v1020
  %v1024 = vadd.f32 %v1015, %v1020
  %v1025 = vadd.f32 %v1016, %v1020
  %v1026 = vmul.f32 %v1022, 0.2
  %v1027 = vmul.f32 %v1023, 0.2
  %v1028 = vmul.f32 %v1024, 0.2
  %v1029 = vmul.f32 %v1025, 0.2
  %v1030 = vmax.f32 %v1022, %v1026
  %v1031 = vmax.f32 %v1023, %v1027
  %v1032 = vmax.f32 %v1024, %v1028
  %v1033 = vmax.f32 %v1025, %v1029
  %v1034 = vld [vmem:[%s2] sm:$0xff]
  %v1036 = vcombine.high %v1034, %v1034
  %vm1038 = vcmask 1043456
  %v1039 = vsel %vm1038, %v1034, 0.0
  %v1040 = vrot.slane %v1039, 4
  %v1041 = vadd.f32 %v1039, %v1040
  %v1042 = vrot.slane %v1041, 2
  %v1043 = vadd.f32 %v1041, %v1042
  %v1044 = vrot.slane %v1043, 1
  %v1045 = vadd.f32 %v1043, %v1044
  %v1046 = vsel %vm1038, %v1036, 0.0
  %v1047 = vrot.slane %v1046, 4
  %v1048 = vadd.f32 %v1046, %v1047
  %v1049 = vrot.slane %v1048, 2
  %v1050 = vadd.f32 %v1048, %v1049
  %v1051 = vrot.slane %v1050, 1
  %v1052 = vadd.f32 %v1050, %v1051
  %v1053 = vmax.f32 %v1045, 0.0
  %v1054 = vmax.f32 %v1052, 0.0
  %v1055 = vmin.f32 %v1053, 1.0
  %v1056 = vmin.f32 %v1054, 1.0
  %v1057 = vmul.f32 %v1030, %v1055
  %v1058 = vmul.f32 %v1031, %v1056
  %1059 = vst [vmem:[%s7] sm:$0xff] %v1057
  %1060 = vst [vmem:[%s7 + $0x8] sm:$0xff] %v1058
  %s1061 = scalar_lea.vmem %s2, 8
  %v1062 = vld [vmem:[%s1061] sm:$0xff]
  %v1064 = vcombine.high %v1062, %v1062
  %v1066 = vsel %vm1038, %v1062, 0.0
  %v1067 = vrot.slane %v1066, 4
  %v1068 = vadd.f32 %v1066, %v1067
  %v1069 = vrot.slane %v1068, 2
  %v1070 = vadd.f32 %v1068, %v1069
  %v1071 = vrot.slane %v1070, 1
  %v1072 = vadd.f32 %v1070, %v1071
  %v1073 = vsel %vm1038, %v1064, 0.0
  %v1074 = vrot.slane %v1073, 4
  %v1075 = vadd.f32 %v1073, %v1074
  %v1076 = vrot.slane %v1075, 2
  %v1077 = vadd.f32 %v1075, %v1076
  %v1078 = vrot.slane %v1077, 1
  %v1079 = vadd.f32 %v1077, %v1078
  %v1080 = vmax.f32 %v1072, 0.0
  %v1081 = vmax.f32 %v1079, 0.0
  %v1082 = vmin.f32 %v1080, 1.0
  %v1083 = vmin.f32 %v1081, 1.0
  %v1084 = vmul.f32 %v1032, %v1082
  %v1085 = vmul.f32 %v1033, %v1083
  %s1086 = scalar_lea.vmem %s7, 16
  %1087 = vst [vmem:[%s1086] sm:$0xff] %v1084
  %1088 = vst [vmem:[%s1086 + $0x8] sm:$0xff] %v1085
  // Predicated region
  $region30: #{key_mul_d.1} parent=0 // pred_check
    _
  $region31: #{key_mul_d.1} parent=0 // pred_check_branch
    %1090 = sbr.rel (0) target = $region33
  $region32: #{key_mul_d.1} parent=0 // pred_region
    _
  $region33: #{key_mul_d.1} parent=0 // pred_fallthru
    _
  // Predicated region
  $region34: #{key_mul_d.1} parent=0 // pred_check
    _
  $region35: #{key_mul_d.1} parent=0 // pred_check_branch
    %1092 = sbr.rel (0) target = $region37
  $region36: #{key_mul_d.1} parent=0 // pred_region
    _
  $region37: #{key_mul_d.1} parent=0 // pred_fallthru
    _

</llo_original>
